<compile_context>
chip_gen: v6e
topology: v6e:2x2x1
jax: 0.10.0
libtpu: 0.0.40
codegen_flags: <defaults>
</compile_context>

<pallas_src>
import functools

import jax
import jax.numpy as jnp
import numpy as np
from jax.experimental import pallas as pl
from jax.experimental.pallas import tpu as pltpu

LANE = 128
BL_EPS = 1e-8  # BitLinear-internal RMSNorm eps
# TODO(synk): confirm mmfreelm BitLinear's internal RMSNorm eps (1e-8 here) matches upstream.


def _pad_lanes(d):
    return max(((d + LANE - 1) // LANE) * LANE, LANE)


# ----------------------------- in-kernel math helpers -----------------------------

def _rmsnorm(x, g, inv_d, eps):
    # sum * (1/true_D): exact even when x/g are zero-padded past the true feature count.
    var = jnp.sum(x * x, axis=-1, keepdims=True) * inv_d
    return x * jax.lax.rsqrt(var + eps) * g


def _act_quant(xn):
    """Per-row int8-style fake quant. Returns (integer q as bf16, dequant scale amax/127)."""
    amax = jnp.maximum(jnp.max(jnp.abs(xn), axis=-1, keepdims=True), 1e-5)
    q = jnp.clip(jnp.round(xn * (127.0 / amax)), -128.0, 127.0)  # exact ints in [-128,127]
    return q.astype(jnp.bfloat16), amax * (1.0 / 127.0)


def _bitlinear(x, g_folded, w_tern_bf16, inv_d, bias=None):
    """Inference-path BitLinear.  The weight-dequant scale is folded into `g_folded` by the
    wrapper, so ternary bf16 weights are used directly on the MXU; the only per-row scaling
    left is amax/127 applied after the (exact-integer) matmul."""
    q, deq = _act_quant(_rmsnorm(x, g_folded, inv_d, BL_EPS))
    y = jnp.dot(q, w_tern_bf16, preferred_element_type=jnp.float32) * deq
    if bias is not None:
        y = y + bias
    return y


# ----------------------------------- Pallas kernel --------------------------------

def adaln_kernel(cond_ref,
                 g_in_ref, w_in_ref,
                 g_gate_ref, wg_gate_ref, wg_up_ref,
                 g_down_ref, w_down_ref,
                 g_out_ref, w_out_ref, b_out_ref,
                 norm_w_ref,
                 g_fin_ref, w_fin_ref, b_fin_ref,
                 o_ref, *, eps, inv_in, inv_hid, inv_inter, inv_out):
    x = cond_ref[...].astype(jnp.float32)

    # input_proj (BitLinear, no bias)
    x = _bitlinear(x, g_in_ref[...], w_in_ref[...], inv_in)

    # HGRNBitMLP: one shared act-quant, two dots (no slicing of a 2*inter-wide slab)
    q, deq = _act_quant(_rmsnorm(x, g_gate_ref[...], inv_hid, BL_EPS))
    gate = jnp.dot(q, wg_gate_ref[...], preferred_element_type=jnp.float32) * deq
    up = jnp.dot(q, wg_up_ref[...], preferred_element_type=jnp.float32) * deq
    hidden = (gate * jax.nn.sigmoid(gate)) * up  # swish / SiLU
    x = _bitlinear(hidden, g_down_ref[...], w_down_ref[...], inv_inter)

    # output_proj (BitLinear with bias)
    x = _bitlinear(x, g_out_ref[...], w_out_ref[...], inv_hid, bias=b_out_ref[...])

    # module-level RMSNorm(output_dim, eps)
    x = _rmsnorm(x, norm_w_ref[...], inv_out, eps)

    # out_proj (BitLinear with bias) -- output padded to 128 lanes => unmasked full-width vst
    x = _bitlinear(x, g_fin_ref[...], w_fin_ref[...], inv_out, bias=b_fin_ref[...])

    o_ref[...] = x.astype(o_ref.dtype)


# --------------------------- param glue (plain JAX, once) ---------------------------

def _quant_ternary(w):
    """BitNet-1.58 weight quant: returns ([in, out] ternary bf16, dequant scale)."""
    s = 1.0 / jnp.maximum(jnp.mean(jnp.abs(w)), 1e-5)
    tern = jnp.clip(jnp.round(w * s), -1.0, 1.0)
    return tern.T.astype(jnp.bfloat16), 1.0 / s


def _pad2(a, rows, cols):
    r, c = a.shape
    return jnp.pad(a, ((0, rows - r), (0, cols - c)))


def prepare_kernel_params(raw):
    """Quantize/transpose weights to ternary bf16, fold weight-dequant scales into the
    corresponding BitLinear RMSNorm gains, split gate_proj into gate/up halves, and
    zero-pad every feature width to a 128-lane multiple (gains/biases/K-rows zero-padded
    so the padded lanes stay exactly zero)."""
    in_dim = raw["w_in"].shape[1]
    hid = raw["w_in"].shape[0]
    inter = raw["w_gate"].shape[0] // 2
    out_dim = raw["w_fin"].shape[0]

    in_p, hid_p, inter_p, out_p = map(_pad_lanes, (in_dim, hid, inter, out_dim))
    assert inter_p == inter, "intermediate_size is already a multiple of 128"

    kp = {"dims": dict(in_dim=in_dim, hid=hid, inter=inter, out_dim=out_dim,
                       in_p=in_p, hid_p=hid_p, out_p=out_p)}

    def prep(w_raw, g_raw, k_pad, n_pad):
        # RMSNorm-gain scaling commutes exactly through activation_quant, so folding the
        # weight-dequant scale into the gain reproduces act_quant(norm(x)) @ (tern * dq).
        tern_t, dq = _quant_ternary(w_raw)                      # (K, N) ternary bf16
        w = _pad2(tern_t, k_pad, n_pad)                          # padded rows/cols are zero
        g = jnp.pad(g_raw * dq, ((0, 0), (0, k_pad - g_raw.shape[1])))
        return w, g

    kp["w_in"], kp["g_in"] = prep(raw["w_in"], raw["g_in"], in_p, hid_p)
    wg, kp["g_gate"] = prep(raw["w_gate"], raw["g_gate"], hid_p, 2 * inter)
    kp["w_gate_g"], kp["w_gate_u"] = wg[:, :inter], wg[:, inter:]
    kp["w_down"], kp["g_down"] = prep(raw["w_down"], raw["g_down"], inter, hid_p)
    kp["w_out"], kp["g_out"] = prep(raw["w_out"], raw["g_out"], hid_p, out_p)
    kp["w_fin"], kp["g_fin"] = prep(raw["w_fin"], raw["g_fin"], out_p, out_p)

    pad_row = lambda v, n: jnp.pad(v, ((0, 0), (0, n - v.shape[1])))
    kp["b_out"] = pad_row(raw["b_out"], out_p)
    kp["norm_w"] = pad_row(raw["norm_w"], out_p)
    kp["b_fin"] = pad_row(raw["b_fin"], out_p)
    return kp


# ------------------------------------- wrapper -------------------------------------

def _choose_tm(B, cap=512):
    # Keep grid >= 2 for moderate/large batches so v7x's two TensorCores both get work;
    # raise the per-step tile cap to 512 rows (per-tile VMEM stays ~1-2 MiB, well under
    # every generation's scoped limit, so no vmem_limit_bytes bump is needed).
    if B >= 16 and B % 16 == 0:
        tm = min(B // 2, cap)
        while B % tm != 0:
            tm //= 2
        return max(tm, 8)
    return B  # tiny/odd batches: single grid step (block equals the full batch dim)


def adaln_conditioning(condition, kp, *, eps=1e-6, tm=None):
    B, in_dim = condition.shape
    d = kp["dims"]
    assert in_dim == d["in_dim"]
    in_p, out_p, out_dim = d["in_p"], d["out_p"], d["out_dim"]

    if in_p != in_dim:
        condition = jnp.pad(condition, ((0, 0), (0, in_p - in_dim)))

    if tm is None:
        tm = _choose_tm(B)
    assert B % tm == 0

    operands = (
        condition,
        kp["g_in"], kp["w_in"],
        kp["g_gate"], kp["w_gate_g"], kp["w_gate_u"],
        kp["g_down"], kp["w_down"],
        kp["g_out"], kp["w_out"], kp["b_out"],
        kp["norm_w"],
        kp["g_fin"], kp["w_fin"], kp["b_fin"],
    )

    full = lambda a: pl.BlockSpec(a.shape, lambda i: (0,) * a.ndim)
    in_specs = [pl.BlockSpec((tm, in_p), lambda i: (i, 0))]
    in_specs += [full(a) for a in operands[1:]]

    kernel = functools.partial(
        adaln_kernel, eps=eps,
        inv_in=1.0 / d["in_dim"], inv_hid=1.0 / d["hid"],
        inv_inter=1.0 / d["inter"], inv_out=1.0 / d["out_dim"])

    out = pl.pallas_call(
        kernel,
        out_shape=jax.ShapeDtypeStruct((B, out_p), jnp.float32),
        grid=(B // tm,),
        in_specs=in_specs,
        out_specs=pl.BlockSpec((tm, out_p), lambda i: (i, 0)),
        compiler_params=pltpu.CompilerParams(dimension_semantics=("parallel",)),
    )(*operands)

    return out[:, :out_dim] if out_p != out_dim else out


# ------------------------------ pure-JAX reference ---------------------------------

def _weight_quant_ref(w):
    s = 1.0 / jnp.maximum(jnp.mean(jnp.abs(w)), 1e-5)
    return jnp.clip(jnp.round(w * s), -1.0, 1.0) / s


def _act_quant_ref(x):
    scale = 127.0 / jnp.maximum(jnp.max(jnp.abs(x), axis=-1, keepdims=True), 1e-5)
    return jnp.clip(jnp.round(x * scale), -128.0, 127.0) / scale


def _rmsnorm_ref(x, g, eps):
    var = jnp.mean(x * x, axis=-1, keepdims=True)
    return x * jax.lax.rsqrt(var + eps) * g


def _bitlinear_ref(x, g, w_raw, bias=None, eps=1e-8):
    xn = _rmsnorm_ref(x, g, eps)
    xq = _act_quant_ref(xn)
    y = jnp.dot(xq, _weight_quant_ref(w_raw).T,
                preferred_element_type=jnp.float32,
                precision=jax.lax.Precision.HIGHEST)
    if bias is not None:
        y = y + bias
    return y


def adaln_reference(condition, raw, *, eps=1e-6):
    x = condition.astype(jnp.float32)
    x = _bitlinear_ref(x, raw["g_in"], raw["w_in"])
    y = _bitlinear_ref(x, raw["g_gate"], raw["w_gate"])
    inter = raw["w_gate"].shape[0] // 2
    gate, up = y[:, :inter], y[:, inter:]
    x = _bitlinear_ref((gate * jax.nn.sigmoid(gate)) * up, raw["g_down"], raw["w_down"])
    x = _bitlinear_ref(x, raw["g_out"], raw["w_out"], bias=raw["b_out"])
    x = _rmsnorm_ref(x, raw["norm_w"], eps)
    x = _bitlinear_ref(x, raw["g_fin"], raw["w_fin"], bias=raw["b_fin"])
    return x


# --------------------------------------- main --------------------------------------

if __name__ == "__main__":
    key = jax.random.PRNGKey(0)

    # module config (small, matching AdaLNConditioning.__init__ logic)
    input_dim, hidden_size, output_dim = 32, 32, 64
    # intermediate_size = 256 * ceil(int(32 * 4 * 2 / 3) / 256) = 256
    intermediate = 256
    batch = 16

    ks = jax.random.split(key, 8)
    condition = jax.random.normal(ks[0], (batch, input_dim), jnp.float32)

    def make_w(k, out_f, in_f):
        # torch.nn.Linear-style full-precision weight [out, in]
        return jax.random.normal(k, (out_f, in_f), jnp.float32) * (1.0 / np.sqrt(in_f))

    raw_params = {
        # BitLinear internal RMSNorm gains (init = ones), stored as (1, D) rows
        "g_in":   jnp.ones((1, input_dim), jnp.float32),
        "w_in":   make_w(ks[1], hidden_size, input_dim),
        "g_gate": jnp.ones((1, hidden_size), jnp.float32),
        "w_gate": make_w(ks[2], 2 * intermediate, hidden_size),
        "g_down": jnp.ones((1, intermediate), jnp.float32),
        "w_down": make_w(ks[3], hidden_size, intermediate),
        "g_out":  jnp.ones((1, hidden_size), jnp.float32),
        "w_out":  make_w(ks[4], output_dim, hidden_size),
        "b_out":  0.1 * jax.random.normal(ks[5], (1, output_dim), jnp.float32),
        # module-level RMSNorm(output_dim) weight (init = ones)
        "norm_w": jnp.ones((1, output_dim), jnp.float32),
        "g_fin":  jnp.ones((1, output_dim), jnp.float32),
        "w_fin":  make_w(ks[6], output_dim, output_dim),
        "b_fin":  0.1 * jax.random.normal(ks[7], (1, output_dim), jnp.float32),
    }

    kparams = prepare_kernel_params(raw_params)

    out = adaln_conditioning(condition, kparams, eps=1e-6)
    out = jax.block_until_ready(out)

    ref = jax.block_until_ready(adaln_reference(condition, raw_params, eps=1e-6))
    np.testing.assert_allclose(np.asarray(out), np.asarray(ref), rtol=1e-3, atol=1e-3)

    print("KERNEL_OK")
</pallas_src>

<mosaic_0001>
module attributes {stable_mosaic.version = 11 : i64} {
  func.func @adaln_kernel(%arg0: i32, %arg1: memref<8x128xf32, #tpu.memory_space<vmem>>, %arg2: memref<1x128xf32, #tpu.memory_space<vmem>>, %arg3: memref<128x128xbf16, #tpu.memory_space<vmem>>, %arg4: memref<1x128xf32, #tpu.memory_space<vmem>>, %arg5: memref<128x256xbf16, #tpu.memory_space<vmem>>, %arg6: memref<128x256xbf16, #tpu.memory_space<vmem>>, %arg7: memref<1x256xf32, #tpu.memory_space<vmem>>, %arg8: memref<256x128xbf16, #tpu.memory_space<vmem>>, %arg9: memref<1x128xf32, #tpu.memory_space<vmem>>, %arg10: memref<128x128xbf16, #tpu.memory_space<vmem>>, %arg11: memref<1x128xf32, #tpu.memory_space<vmem>>, %arg12: memref<1x128xf32, #tpu.memory_space<vmem>>, %arg13: memref<1x128xf32, #tpu.memory_space<vmem>>, %arg14: memref<128x128xbf16, #tpu.memory_space<vmem>>, %arg15: memref<1x128xf32, #tpu.memory_space<vmem>>, %arg16: memref<8x128xf32, #tpu.memory_space<vmem>>) attributes {dimension_semantics = [#tpu.dimension_semantics<parallel>], iteration_bounds = array<i64: 2>, scalar_prefetch = 0 : i64, scratch_operands = 0 : i64, tpu.core_type = #tpu.core_type<tc>, window_params = [{transform_indices = @transform_0, window_bounds = array<i64: 8, 128>}, {pipeline_mode = #tpu.pipeline_mode<synchronous>, transform_indices = @transform_1, window_bounds = array<i64: 1, 128>}, {pipeline_mode = #tpu.pipeline_mode<synchronous>, transform_indices = @transform_2, window_bounds = array<i64: 128, 128>}, {pipeline_mode = #tpu.pipeline_mode<synchronous>, transform_indices = @transform_3, window_bounds = array<i64: 1, 128>}, {pipeline_mode = #tpu.pipeline_mode<synchronous>, transform_indices = @transform_4, window_bounds = array<i64: 128, 256>}, {pipeline_mode = #tpu.pipeline_mode<synchronous>, transform_indices = @transform_5, window_bounds = array<i64: 128, 256>}, {pipeline_mode = #tpu.pipeline_mode<synchronous>, transform_indices = @transform_6, window_bounds = array<i64: 1, 256>}, {pipeline_mode = #tpu.pipeline_mode<synchronous>, transform_indices = @transform_7, window_bounds = array<i64: 256, 128>}, {pipeline_mode = #tpu.pipeline_mode<synchronous>, transform_indices = @transform_8, window_bounds = array<i64: 1, 128>}, {pipeline_mode = #tpu.pipeline_mode<synchronous>, transform_indices = @transform_9, window_bounds = array<i64: 128, 128>}, {pipeline_mode = #tpu.pipeline_mode<synchronous>, transform_indices = @transform_10, window_bounds = array<i64: 1, 128>}, {pipeline_mode = #tpu.pipeline_mode<synchronous>, transform_indices = @transform_11, window_bounds = array<i64: 1, 128>}, {pipeline_mode = #tpu.pipeline_mode<synchronous>, transform_indices = @transform_12, window_bounds = array<i64: 1, 128>}, {pipeline_mode = #tpu.pipeline_mode<synchronous>, transform_indices = @transform_13, window_bounds = array<i64: 128, 128>}, {pipeline_mode = #tpu.pipeline_mode<synchronous>, transform_indices = @transform_14, window_bounds = array<i64: 1, 128>}, {transform_indices = @transform_15, window_bounds = array<i64: 8, 128>}]} {
    %c0 = arith.constant 0 : index
    %c0_0 = arith.constant 0 : index
    %0 = vector.load %arg1[%c0, %c0_0] : memref<8x128xf32, #tpu.memory_space<vmem>>, vector<8x128xf32>
    %c0_1 = arith.constant 0 : index
    %c0_2 = arith.constant 0 : index
    %1 = vector.load %arg2[%c0_1, %c0_2] : memref<1x128xf32, #tpu.memory_space<vmem>>, vector<1x128xf32>
    %c0_3 = arith.constant 0 : index
    %c0_4 = arith.constant 0 : index
    %2 = vector.load %arg3[%c0_3, %c0_4] : memref<128x128xbf16, #tpu.memory_space<vmem>>, vector<128x128xbf16>
    %3 = arith.mulf %0, %0 : vector<8x128xf32>
    %cst = arith.constant dense<0.000000e+00> : vector<8xf32>
    %4 = vector.multi_reduction <add>, %3, %cst [1] : vector<8x128xf32> to vector<8xf32>
    %5 = vector.shape_cast %4 : vector<8xf32> to vector<8x1xf32>
    %cst_5 = arith.constant 3.125000e-02 : f32
    %6 = vector.broadcast %cst_5 : f32 to vector<8x1xf32>
    %7 = arith.mulf %5, %6 : vector<8x1xf32>
    %cst_6 = arith.constant 9.99999993E-9 : f32
    %8 = vector.broadcast %cst_6 : f32 to vector<8x1xf32>
    %9 = arith.addf %7, %8 : vector<8x1xf32>
    %10 = math.rsqrt %9 : vector<8x1xf32>
    %11 = vector.broadcast %10 : vector<8x1xf32> to vector<8x128xf32>
    %12 = arith.mulf %0, %11 : vector<8x128xf32>
    %13 = vector.broadcast %1 : vector<1x128xf32> to vector<8x128xf32>
    %14 = arith.mulf %12, %13 : vector<8x128xf32>
    %15 = math.absf %14 : vector<8x128xf32>
    %cst_7 = arith.constant dense<0xFF800000> : vector<8xf32>
    %16 = vector.multi_reduction <maximumf>, %15, %cst_7 [1] : vector<8x128xf32> to vector<8xf32>
    %17 = vector.shape_cast %16 : vector<8xf32> to vector<8x1xf32>
    %cst_8 = arith.constant 9.99999974E-6 : f32
    %18 = vector.broadcast %cst_8 : f32 to vector<8x1xf32>
    %19 = arith.maximumf %17, %18 : vector<8x1xf32>
    %cst_9 = arith.constant 1.270000e+02 : f32
    %20 = vector.broadcast %cst_9 : f32 to vector<8x1xf32>
    %21 = arith.divf %20, %19 : vector<8x1xf32>
    %22 = vector.broadcast %21 : vector<8x1xf32> to vector<8x128xf32>
    %23 = arith.mulf %14, %22 : vector<8x128xf32>
    %24 = math.roundeven %23 : vector<8x128xf32>
    %cst_10 = arith.constant -1.280000e+02 : f32
    %cst_11 = arith.constant 1.270000e+02 : f32
    %25 = vector.broadcast %cst_10 : f32 to vector<8x128xf32>
    %26 = arith.maximumf %25, %24 : vector<8x128xf32>
    %27 = vector.broadcast %cst_11 : f32 to vector<8x128xf32>
    %28 = arith.minimumf %27, %26 : vector<8x128xf32>
    %29 = arith.truncf %28 : vector<8x128xf32> to vector<8x128xbf16>
    %cst_12 = arith.constant 0.00787401571 : f32
    %30 = vector.broadcast %cst_12 : f32 to vector<8x1xf32>
    %31 = arith.mulf %19, %30 : vector<8x1xf32>
    %cst_13 = arith.constant dense<0.000000e+00> : vector<8x128xf32>
    %32 = tpu.matmul %29, %2, %cst_13 {dimension_numbers = #tpu.dot_dimension_numbers<[1], [0], [0], [1], [0, 0, 1, 1], [], []>} : vector<8x128xbf16>, vector<128x128xbf16>, vector<8x128xf32> -> vector<8x128xf32>
    %33 = vector.broadcast %31 : vector<8x1xf32> to vector<8x128xf32>
    %34 = arith.mulf %32, %33 : vector<8x128xf32>
    %c0_14 = arith.constant 0 : index
    %c0_15 = arith.constant 0 : index
    %35 = vector.load %arg4[%c0_14, %c0_15] : memref<1x128xf32, #tpu.memory_space<vmem>>, vector<1x128xf32>
    %36 = arith.mulf %34, %34 : vector<8x128xf32>
    %cst_16 = arith.constant dense<0.000000e+00> : vector<8xf32>
    %37 = vector.multi_reduction <add>, %36, %cst_16 [1] : vector<8x128xf32> to vector<8xf32>
    %38 = vector.shape_cast %37 : vector<8xf32> to vector<8x1xf32>
    %cst_17 = arith.constant 3.125000e-02 : f32
    %39 = vector.broadcast %cst_17 : f32 to vector<8x1xf32>
    %40 = arith.mulf %38, %39 : vector<8x1xf32>
    %cst_18 = arith.constant 9.99999993E-9 : f32
    %41 = vector.broadcast %cst_18 : f32 to vector<8x1xf32>
    %42 = arith.addf %40, %41 : vector<8x1xf32>
    %43 = math.rsqrt %42 : vector<8x1xf32>
    %44 = vector.broadcast %43 : vector<8x1xf32> to vector<8x128xf32>
    %45 = arith.mulf %34, %44 : vector<8x128xf32>
    %46 = vector.broadcast %35 : vector<1x128xf32> to vector<8x128xf32>
    %47 = arith.mulf %45, %46 : vector<8x128xf32>
    %48 = math.absf %47 : vector<8x128xf32>
    %cst_19 = arith.constant dense<0xFF800000> : vector<8xf32>
    %49 = vector.multi_reduction <maximumf>, %48, %cst_19 [1] : vector<8x128xf32> to vector<8xf32>
    %50 = vector.shape_cast %49 : vector<8xf32> to vector<8x1xf32>
    %cst_20 = arith.constant 9.99999974E-6 : f32
    %51 = vector.broadcast %cst_20 : f32 to vector<8x1xf32>
    %52 = arith.maximumf %50, %51 : vector<8x1xf32>
    %cst_21 = arith.constant 1.270000e+02 : f32
    %53 = vector.broadcast %cst_21 : f32 to vector<8x1xf32>
    %54 = arith.divf %53, %52 : vector<8x1xf32>
    %55 = vector.broadcast %54 : vector<8x1xf32> to vector<8x128xf32>
    %56 = arith.mulf %47, %55 : vector<8x128xf32>
    %57 = math.roundeven %56 : vector<8x128xf32>
    %cst_22 = arith.constant -1.280000e+02 : f32
    %cst_23 = arith.constant 1.270000e+02 : f32
    %58 = vector.broadcast %cst_22 : f32 to vector<8x128xf32>
    %59 = arith.maximumf %58, %57 : vector<8x128xf32>
    %60 = vector.broadcast %cst_23 : f32 to vector<8x128xf32>
    %61 = arith.minimumf %60, %59 : vector<8x128xf32>
    %62 = arith.truncf %61 : vector<8x128xf32> to vector<8x128xbf16>
    %cst_24 = arith.constant 0.00787401571 : f32
    %63 = vector.broadcast %cst_24 : f32 to vector<8x1xf32>
    %64 = arith.mulf %52, %63 : vector<8x1xf32>
    %c0_25 = arith.constant 0 : index
    %c0_26 = arith.constant 0 : index
    %65 = vector.load %arg5[%c0_25, %c0_26] : memref<128x256xbf16, #tpu.memory_space<vmem>>, vector<128x256xbf16>
    %cst_27 = arith.constant dense<0.000000e+00> : vector<8x256xf32>
    %66 = tpu.matmul %62, %65, %cst_27 {dimension_numbers = #tpu.dot_dimension_numbers<[1], [0], [0], [1], [0, 0, 1, 1], [], []>} : vector<8x128xbf16>, vector<128x256xbf16>, vector<8x256xf32> -> vector<8x256xf32>
    %67 = vector.broadcast %64 : vector<8x1xf32> to vector<8x256xf32>
    %68 = arith.mulf %66, %67 : vector<8x256xf32>
    %c0_28 = arith.constant 0 : index
    %c0_29 = arith.constant 0 : index
    %69 = vector.load %arg6[%c0_28, %c0_29] : memref<128x256xbf16, #tpu.memory_space<vmem>>, vector<128x256xbf16>
    %cst_30 = arith.constant dense<0.000000e+00> : vector<8x256xf32>
    %70 = tpu.matmul %62, %69, %cst_30 {dimension_numbers = #tpu.dot_dimension_numbers<[1], [0], [0], [1], [0, 0, 1, 1], [], []>} : vector<8x128xbf16>, vector<128x256xbf16>, vector<8x256xf32> -> vector<8x256xf32>
    %71 = vector.broadcast %64 : vector<8x1xf32> to vector<8x256xf32>
    %72 = arith.mulf %70, %71 : vector<8x256xf32>
    %73 = arith.negf %68 : vector<8x256xf32>
    %74 = math.exp %73 : vector<8x256xf32>
    %cst_31 = arith.constant 1.000000e+00 : f32
    %75 = vector.broadcast %cst_31 : f32 to vector<8x256xf32>
    %76 = arith.addf %75, %74 : vector<8x256xf32>
    %77 = arith.divf %75, %76 : vector<8x256xf32>
    %78 = arith.mulf %68, %77 : vector<8x256xf32>
    %79 = arith.mulf %78, %72 : vector<8x256xf32>
    %c0_32 = arith.constant 0 : index
    %c0_33 = arith.constant 0 : index
    %80 = vector.load %arg7[%c0_32, %c0_33] : memref<1x256xf32, #tpu.memory_space<vmem>>, vector<1x256xf32>
    %c0_34 = arith.constant 0 : index
    %c0_35 = arith.constant 0 : index
    %81 = vector.load %arg8[%c0_34, %c0_35] : memref<256x128xbf16, #tpu.memory_space<vmem>>, vector<256x128xbf16>
    %82 = arith.mulf %79, %79 : vector<8x256xf32>
    %cst_36 = arith.constant dense<0.000000e+00> : vector<8xf32>
    %83 = vector.multi_reduction <add>, %82, %cst_36 [1] : vector<8x256xf32> to vector<8xf32>
    %84 = vector.shape_cast %83 : vector<8xf32> to vector<8x1xf32>
    %cst_37 = arith.constant 3.906250e-03 : f32
    %85 = vector.broadcast %cst_37 : f32 to vector<8x1xf32>
    %86 = arith.mulf %84, %85 : vector<8x1xf32>
    %cst_38 = arith.constant 9.99999993E-9 : f32
    %87 = vector.broadcast %cst_38 : f32 to vector<8x1xf32>
    %88 = arith.addf %86, %87 : vector<8x1xf32>
    %89 = math.rsqrt %88 : vector<8x1xf32>
    %90 = vector.broadcast %89 : vector<8x1xf32> to vector<8x256xf32>
    %91 = arith.mulf %79, %90 : vector<8x256xf32>
    %92 = vector.broadcast %80 : vector<1x256xf32> to vector<8x256xf32>
    %93 = arith.mulf %91, %92 : vector<8x256xf32>
    %94 = math.absf %93 : vector<8x256xf32>
    %cst_39 = arith.constant dense<0xFF800000> : vector<8xf32>
    %95 = vector.multi_reduction <maximumf>, %94, %cst_39 [1] : vector<8x256xf32> to vector<8xf32>
    %96 = vector.shape_cast %95 : vector<8xf32> to vector<8x1xf32>
    %cst_40 = arith.constant 9.99999974E-6 : f32
    %97 = vector.broadcast %cst_40 : f32 to vector<8x1xf32>
    %98 = arith.maximumf %96, %97 : vector<8x1xf32>
    %cst_41 = arith.constant 1.270000e+02 : f32
    %99 = vector.broadcast %cst_41 : f32 to vector<8x1xf32>
    %100 = arith.divf %99, %98 : vector<8x1xf32>
    %101 = vector.broadcast %100 : vector<8x1xf32> to vector<8x256xf32>
    %102 = arith.mulf %93, %101 : vector<8x256xf32>
    %103 = math.roundeven %102 : vector<8x256xf32>
    %cst_42 = arith.constant -1.280000e+02 : f32
    %cst_43 = arith.constant 1.270000e+02 : f32
    %104 = vector.broadcast %cst_42 : f32 to vector<8x256xf32>
    %105 = arith.maximumf %104, %103 : vector<8x256xf32>
    %106 = vector.broadcast %cst_43 : f32 to vector<8x256xf32>
    %107 = arith.minimumf %106, %105 : vector<8x256xf32>
    %108 = arith.truncf %107 : vector<8x256xf32> to vector<8x256xbf16>
    %cst_44 = arith.constant 0.00787401571 : f32
    %109 = vector.broadcast %cst_44 : f32 to vector<8x1xf32>
    %110 = arith.mulf %98, %109 : vector<8x1xf32>
    %cst_45 = arith.constant dense<0.000000e+00> : vector<8x128xf32>
    %111 = tpu.matmul %108, %81, %cst_45 {dimension_numbers = #tpu.dot_dimension_numbers<[1], [0], [0], [1], [0, 0, 1, 1], [], []>} : vector<8x256xbf16>, vector<256x128xbf16>, vector<8x128xf32> -> vector<8x128xf32>
    %112 = vector.broadcast %110 : vector<8x1xf32> to vector<8x128xf32>
    %113 = arith.mulf %111, %112 : vector<8x128xf32>
    %c0_46 = arith.constant 0 : index
    %c0_47 = arith.constant 0 : index
    %114 = vector.load %arg9[%c0_46, %c0_47] : memref<1x128xf32, #tpu.memory_space<vmem>>, vector<1x128xf32>
    %c0_48 = arith.constant 0 : index
    %c0_49 = arith.constant 0 : index
    %115 = vector.load %arg10[%c0_48, %c0_49] : memref<128x128xbf16, #tpu.memory_space<vmem>>, vector<128x128xbf16>
    %c0_50 = arith.constant 0 : index
    %c0_51 = arith.constant 0 : index
    %116 = vector.load %arg11[%c0_50, %c0_51] : memref<1x128xf32, #tpu.memory_space<vmem>>, vector<1x128xf32>
    %117 = arith.mulf %113, %113 : vector<8x128xf32>
    %cst_52 = arith.constant dense<0.000000e+00> : vector<8xf32>
    %118 = vector.multi_reduction <add>, %117, %cst_52 [1] : vector<8x128xf32> to vector<8xf32>
    %119 = vector.shape_cast %118 : vector<8xf32> to vector<8x1xf32>
    %cst_53 = arith.constant 3.125000e-02 : f32
    %120 = vector.broadcast %cst_53 : f32 to vector<8x1xf32>
    %121 = arith.mulf %119, %120 : vector<8x1xf32>
    %cst_54 = arith.constant 9.99999993E-9 : f32
    %122 = vector.broadcast %cst_54 : f32 to vector<8x1xf32>
    %123 = arith.addf %121, %122 : vector<8x1xf32>
    %124 = math.rsqrt %123 : vector<8x1xf32>
    %125 = vector.broadcast %124 : vector<8x1xf32> to vector<8x128xf32>
    %126 = arith.mulf %113, %125 : vector<8x128xf32>
    %127 = vector.broadcast %114 : vector<1x128xf32> to vector<8x128xf32>
    %128 = arith.mulf %126, %127 : vector<8x128xf32>
    %129 = math.absf %128 : vector<8x128xf32>
    %cst_55 = arith.constant dense<0xFF800000> : vector<8xf32>
    %130 = vector.multi_reduction <maximumf>, %129, %cst_55 [1] : vector<8x128xf32> to vector<8xf32>
    %131 = vector.shape_cast %130 : vector<8xf32> to vector<8x1xf32>
    %cst_56 = arith.constant 9.99999974E-6 : f32
    %132 = vector.broadcast %cst_56 : f32 to vector<8x1xf32>
    %133 = arith.maximumf %131, %132 : vector<8x1xf32>
    %cst_57 = arith.constant 1.270000e+02 : f32
    %134 = vector.broadcast %cst_57 : f32 to vector<8x1xf32>
    %135 = arith.divf %134, %133 : vector<8x1xf32>
    %136 = vector.broadcast %135 : vector<8x1xf32> to vector<8x128xf32>
    %137 = arith.mulf %128, %136 : vector<8x128xf32>
    %138 = math.roundeven %137 : vector<8x128xf32>
    %cst_58 = arith.constant -1.280000e+02 : f32
    %cst_59 = arith.constant 1.270000e+02 : f32
    %139 = vector.broadcast %cst_58 : f32 to vector<8x128xf32>
    %140 = arith.maximumf %139, %138 : vector<8x128xf32>
    %141 = vector.broadcast %cst_59 : f32 to vector<8x128xf32>
    %142 = arith.minimumf %141, %140 : vector<8x128xf32>
    %143 = arith.truncf %142 : vector<8x128xf32> to vector<8x128xbf16>
    %cst_60 = arith.constant 0.00787401571 : f32
    %144 = vector.broadcast %cst_60 : f32 to vector<8x1xf32>
    %145 = arith.mulf %133, %144 : vector<8x1xf32>
    %cst_61 = arith.constant dense<0.000000e+00> : vector<8x128xf32>
    %146 = tpu.matmul %143, %115, %cst_61 {dimension_numbers = #tpu.dot_dimension_numbers<[1], [0], [0], [1], [0, 0, 1, 1], [], []>} : vector<8x128xbf16>, vector<128x128xbf16>, vector<8x128xf32> -> vector<8x128xf32>
    %147 = vector.broadcast %145 : vector<8x1xf32> to vector<8x128xf32>
    %148 = arith.mulf %146, %147 : vector<8x128xf32>
    %149 = vector.broadcast %116 : vector<1x128xf32> to vector<8x128xf32>
    %150 = arith.addf %148, %149 : vector<8x128xf32>
    %c0_62 = arith.constant 0 : index
    %c0_63 = arith.constant 0 : index
    %151 = vector.load %arg12[%c0_62, %c0_63] : memref<1x128xf32, #tpu.memory_space<vmem>>, vector<1x128xf32>
    %152 = arith.mulf %150, %150 : vector<8x128xf32>
    %cst_64 = arith.constant dense<0.000000e+00> : vector<8xf32>
    %153 = vector.multi_reduction <add>, %152, %cst_64 [1] : vector<8x128xf32> to vector<8xf32>
    %154 = vector.shape_cast %153 : vector<8xf32> to vector<8x1xf32>
    %cst_65 = arith.constant 1.562500e-02 : f32
    %155 = vector.broadcast %cst_65 : f32 to vector<8x1xf32>
    %156 = arith.mulf %154, %155 : vector<8x1xf32>
    %cst_66 = arith.constant 9.99999997E-7 : f32
    %157 = vector.broadcast %cst_66 : f32 to vector<8x1xf32>
    %158 = arith.addf %156, %157 : vector<8x1xf32>
    %159 = math.rsqrt %158 : vector<8x1xf32>
    %160 = vector.broadcast %159 : vector<8x1xf32> to vector<8x128xf32>
    %161 = arith.mulf %150, %160 : vector<8x128xf32>
    %162 = vector.broadcast %151 : vector<1x128xf32> to vector<8x128xf32>
    %163 = arith.mulf %161, %162 : vector<8x128xf32>
    %c0_67 = arith.constant 0 : index
    %c0_68 = arith.constant 0 : index
    %164 = vector.load %arg13[%c0_67, %c0_68] : memref<1x128xf32, #tpu.memory_space<vmem>>, vector<1x128xf32>
    %c0_69 = arith.constant 0 : index
    %c0_70 = arith.constant 0 : index
    %165 = vector.load %arg14[%c0_69, %c0_70] : memref<128x128xbf16, #tpu.memory_space<vmem>>, vector<128x128xbf16>
    %c0_71 = arith.constant 0 : index
    %c0_72 = arith.constant 0 : index
    %166 = vector.load %arg15[%c0_71, %c0_72] : memref<1x128xf32, #tpu.memory_space<vmem>>, vector<1x128xf32>
    %167 = arith.mulf %163, %163 : vector<8x128xf32>
    %cst_73 = arith.constant dense<0.000000e+00> : vector<8xf32>
    %168 = vector.multi_reduction <add>, %167, %cst_73 [1] : vector<8x128xf32> to vector<8xf32>
    %169 = vector.shape_cast %168 : vector<8xf32> to vector<8x1xf32>
    %cst_74 = arith.constant 1.562500e-02 : f32
    %170 = vector.broadcast %cst_74 : f32 to vector<8x1xf32>
    %171 = arith.mulf %169, %170 : vector<8x1xf32>
    %cst_75 = arith.constant 9.99999993E-9 : f32
    %172 = vector.broadcast %cst_75 : f32 to vector<8x1xf32>
    %173 = arith.addf %171, %172 : vector<8x1xf32>
    %174 = math.rsqrt %173 : vector<8x1xf32>
    %175 = vector.broadcast %174 : vector<8x1xf32> to vector<8x128xf32>
    %176 = arith.mulf %163, %175 : vector<8x128xf32>
    %177 = vector.broadcast %164 : vector<1x128xf32> to vector<8x128xf32>
    %178 = arith.mulf %176, %177 : vector<8x128xf32>
    %179 = math.absf %178 : vector<8x128xf32>
    %cst_76 = arith.constant dense<0xFF800000> : vector<8xf32>
    %180 = vector.multi_reduction <maximumf>, %179, %cst_76 [1] : vector<8x128xf32> to vector<8xf32>
    %181 = vector.shape_cast %180 : vector<8xf32> to vector<8x1xf32>
    %cst_77 = arith.constant 9.99999974E-6 : f32
    %182 = vector.broadcast %cst_77 : f32 to vector<8x1xf32>
    %183 = arith.maximumf %181, %182 : vector<8x1xf32>
    %cst_78 = arith.constant 1.270000e+02 : f32
    %184 = vector.broadcast %cst_78 : f32 to vector<8x1xf32>
    %185 = arith.divf %184, %183 : vector<8x1xf32>
    %186 = vector.broadcast %185 : vector<8x1xf32> to vector<8x128xf32>
    %187 = arith.mulf %178, %186 : vector<8x128xf32>
    %188 = math.roundeven %187 : vector<8x128xf32>
    %cst_79 = arith.constant -1.280000e+02 : f32
    %cst_80 = arith.constant 1.270000e+02 : f32
    %189 = vector.broadcast %cst_79 : f32 to vector<8x128xf32>
    %190 = arith.maximumf %189, %188 : vector<8x128xf32>
    %191 = vector.broadcast %cst_80 : f32 to vector<8x128xf32>
    %192 = arith.minimumf %191, %190 : vector<8x128xf32>
    %193 = arith.truncf %192 : vector<8x128xf32> to vector<8x128xbf16>
    %cst_81 = arith.constant 0.00787401571 : f32
    %194 = vector.broadcast %cst_81 : f32 to vector<8x1xf32>
    %195 = arith.mulf %183, %194 : vector<8x1xf32>
    %cst_82 = arith.constant dense<0.000000e+00> : vector<8x128xf32>
    %196 = tpu.matmul %193, %165, %cst_82 {dimension_numbers = #tpu.dot_dimension_numbers<[1], [0], [0], [1], [0, 0, 1, 1], [], []>} : vector<8x128xbf16>, vector<128x128xbf16>, vector<8x128xf32> -> vector<8x128xf32>
    %197 = vector.broadcast %195 : vector<8x1xf32> to vector<8x128xf32>
    %198 = arith.mulf %196, %197 : vector<8x128xf32>
    %199 = vector.broadcast %166 : vector<1x128xf32> to vector<8x128xf32>
    %200 = arith.addf %198, %199 : vector<8x128xf32>
    %c0_83 = arith.constant 0 : index
    %c0_84 = arith.constant 0 : index
    %201 = vector.load %arg16[%c0_83, %c0_84] : memref<8x128xf32, #tpu.memory_space<vmem>>, vector<8x128xf32>
    tpu.vector_store %arg16[%c0_83, %c0_84], %200 {strides = array<i32>} : memref<8x128xf32, #tpu.memory_space<vmem>>, vector<8x128xf32>,
    return
  }
  func.func @transform_0(%arg0: i32) -> (i32, i32) {
    %c0_i32 = arith.constant 0 : i32
    %c0_i32_0 = arith.constant 0 : i32
    return %arg0, %c0_i32 : i32, i32
  }
  func.func @transform_1(%arg0: i32) -> (i32, i32) {
    %c0_i32 = arith.constant 0 : i32
    %c0_i32_0 = arith.constant 0 : i32
    %c0_i32_1 = arith.constant 0 : i32
    return %c0_i32, %c0_i32_0 : i32, i32
  }
  func.func @transform_2(%arg0: i32) -> (i32, i32) {
    %c0_i32 = arith.constant 0 : i32
    %c0_i32_0 = arith.constant 0 : i32
    %c0_i32_1 = arith.constant 0 : i32
    return %c0_i32, %c0_i32_0 : i32, i32
  }
  func.func @transform_3(%arg0: i32) -> (i32, i32) {
    %c0_i32 = arith.constant 0 : i32
    %c0_i32_0 = arith.constant 0 : i32
    %c0_i32_1 = arith.constant 0 : i32
    return %c0_i32, %c0_i32_0 : i32, i32
  }
  func.func @transform_4(%arg0: i32) -> (i32, i32) {
    %c0_i32 = arith.constant 0 : i32
    %c0_i32_0 = arith.constant 0 : i32
    %c0_i32_1 = arith.constant 0 : i32
    return %c0_i32, %c0_i32_0 : i32, i32
  }
  func.func @transform_5(%arg0: i32) -> (i32, i32) {
    %c0_i32 = arith.constant 0 : i32
    %c0_i32_0 = arith.constant 0 : i32
    %c0_i32_1 = arith.constant 0 : i32
    return %c0_i32, %c0_i32_0 : i32, i32
  }
  func.func @transform_6(%arg0: i32) -> (i32, i32) {
    %c0_i32 = arith.constant 0 : i32
    %c0_i32_0 = arith.constant 0 : i32
    %c0_i32_1 = arith.constant 0 : i32
    return %c0_i32, %c0_i32_0 : i32, i32
  }
  func.func @transform_7(%arg0: i32) -> (i32, i32) {
    %c0_i32 = arith.constant 0 : i32
    %c0_i32_0 = arith.constant 0 : i32
    %c0_i32_1 = arith.constant 0 : i32
    return %c0_i32, %c0_i32_0 : i32, i32
  }
  func.func @transform_8(%arg0: i32) -> (i32, i32) {
    %c0_i32 = arith.constant 0 : i32
    %c0_i32_0 = arith.constant 0 : i32
    %c0_i32_1 = arith.constant 0 : i32
    return %c0_i32, %c0_i32_0 : i32, i32
  }
  func.func @transform_9(%arg0: i32) -> (i32, i32) {
    %c0_i32 = arith.constant 0 : i32
    %c0_i32_0 = arith.constant 0 : i32
    %c0_i32_1 = arith.constant 0 : i32
    return %c0_i32, %c0_i32_0 : i32, i32
  }
  func.func @transform_10(%arg0: i32) -> (i32, i32) {
    %c0_i32 = arith.constant 0 : i32
    %c0_i32_0 = arith.constant 0 : i32
    %c0_i32_1 = arith.constant 0 : i32
    return %c0_i32, %c0_i32_0 : i32, i32
  }
  func.func @transform_11(%arg0: i32) -> (i32, i32) {
    %c0_i32 = arith.constant 0 : i32
    %c0_i32_0 = arith.constant 0 : i32
    %c0_i32_1 = arith.constant 0 : i32
    return %c0_i32, %c0_i32_0 : i32, i32
  }
  func.func @transform_12(%arg0: i32) -> (i32, i32) {
    %c0_i32 = arith.constant 0 : i32
    %c0_i32_0 = arith.constant 0 : i32
    %c0_i32_1 = arith.constant 0 : i32
    return %c0_i32, %c0_i32_0 : i32, i32
  }
  func.func @transform_13(%arg0: i32) -> (i32, i32) {
    %c0_i32 = arith.constant 0 : i32
    %c0_i32_0 = arith.constant 0 : i32
    %c0_i32_1 = arith.constant 0 : i32
    return %c0_i32, %c0_i32_0 : i32, i32
  }
  func.func @transform_14(%arg0: i32) -> (i32, i32) {
    %c0_i32 = arith.constant 0 : i32
    %c0_i32_0 = arith.constant 0 : i32
    %c0_i32_1 = arith.constant 0 : i32
    return %c0_i32, %c0_i32_0 : i32, i32
  }
  func.func @transform_15(%arg0: i32) -> (i32, i32) {
    %c0_i32 = arith.constant 0 : i32
    %c0_i32_0 = arith.constant 0 : i32
    return %arg0, %c0_i32 : i32, i32
  }
}

</mosaic_0001>

<llo_original>
// kernel: tpu_custom_call.1
$region0: #{tpu_custom_call.1}
  #allocation0 [shape = 'u32[]', space=smem, size = 0x4, offset = 0x4, fixed_abs, tag = 'smem constant byte address 0x4 - core index']
  #allocation1 [shape = 'u32[144,128]{1,0:T(1,128)}', space=vmem, size = 0x12000, scoped, tag = 'internal scratch']
  %s0 = inlined_call_operand.hbm [shape: f32[16,128], index: 0, kind: input, shape index: {}]
  %s1 = inlined_call_operand.vmem [shape: f32[1,128], index: 1, kind: input, shape index: {}]
  %s2 = inlined_call_operand.hbm [shape: bf16[128,128], index: 2, kind: input, shape index: {}]
  %s3 = inlined_call_operand.vmem [shape: f32[1,128], index: 3, kind: input, shape index: {}]
  %s4 = inlined_call_operand.hbm [shape: bf16[128,256], index: 4, kind: input, shape index: {}]
  %s5 = inlined_call_operand.hbm [shape: bf16[128,256], index: 5, kind: input, shape index: {}]
  %s6 = inlined_call_operand.vmem [shape: f32[1,256], index: 6, kind: input, shape index: {}]
  %s7 = inlined_call_operand.hbm [shape: bf16[256,128], index: 7, kind: input, shape index: {}]
  %s8 = inlined_call_operand.vmem [shape: f32[1,128], index: 8, kind: input, shape index: {}]
  %s9 = inlined_call_operand.hbm [shape: bf16[128,128], index: 9, kind: input, shape index: {}]
  %s10 = inlined_call_operand.vmem [shape: f32[1,128], index: 10, kind: input, shape index: {}]
  %s11 = inlined_call_operand.vmem [shape: f32[1,128], index: 11, kind: input, shape index: {}]
  %s12 = inlined_call_operand.vmem [shape: f32[1,128], index: 12, kind: input, shape index: {}]
  %s13 = inlined_call_operand.hbm [shape: bf16[128,128], index: 13, kind: input, shape index: {}]
  %s14 = inlined_call_operand.vmem [shape: f32[1,128], index: 14, kind: input, shape index: {}]
  %s15 = inlined_call_operand.hbm [shape: f32[16,128], index: 15, kind: output, shape index: {}]
  %s16 = sld [smem:[#allocation0]]
  $region121: #{tpu_custom_call.1} parent=0
    _
  %s18 = ssub.s32 1, %s16
  %s19 = scalar_select 0, %s18, %s16
  $region1: #{tpu_custom_call.1} parent=0
    #allocation2 [shape = 'u8[8192]{0}', space=vmem, size = 0x2000, scoped, tag = 'input window, operand 0']
    #allocation3 [shape = 's32[2]{0}', space=sflag, size = 0x8, scoped, tag = 'scoped memory for tpu_custom_call.1']
    #allocation4 [shape = 's32[2]{0}', space=sflag, size = 0x8, scoped, tag = 'scoped memory for tpu_custom_call.1']
    #allocation5 [shape = 'u8[32768]{0}', space=vmem, size = 0x8000, scoped, tag = 'input window, operand 2, single buffered']
    #allocation6 [shape = 's32[1]{0}', space=sflag, size = 0x4, scoped, tag = 'scoped memory for tpu_custom_call.1']
    #allocation7 [shape = 'u8[65536]{0}', space=vmem, size = 0x10000, scoped, tag = 'input window, operand 4, single buffered']
    #allocation8 [shape = 'u8[65536]{0}', space=vmem, size = 0x10000, scoped, tag = 'input window, operand 5, single buffered']
    #allocation9 [shape = 's32[1]{0}', space=sflag, size = 0x4, scoped, tag = 'scoped memory for tpu_custom_call.1']
    #allocation10 [shape = 'u8[65536]{0}', space=vmem, size = 0x10000, scoped, tag = 'input window, operand 7, single buffered']
    #allocation11 [shape = 'u8[32768]{0}', space=vmem, size = 0x8000, scoped, tag = 'input window, operand 9, single buffered']
    #allocation12 [shape = 's32[1]{0}', space=sflag, size = 0x4, scoped, tag = 'scoped memory for tpu_custom_call.1']
    #allocation13 [shape = 'u8[32768]{0}', space=vmem, size = 0x8000, scoped, tag = 'input window, operand 13, single buffered']
    #allocation14 [shape = 'u8[8192]{0}', space=vmem, size = 0x2000, scoped, tag = 'output window, operand 0']
    %20 = vsyncpa [#allocation3], 0
    %s21 = scalar_lea.sflag [#allocation3], 1
    %22 = vsyncpa %s21, 0
    %23 = vsyncpa [#allocation6], 0
    %24 = vsyncpa [#allocation9], 0
    %25 = vsyncpa [#allocation12], 0
    %26 = vsyncpa [#allocation4], 0
    %s27 = scalar_lea.sflag [#allocation4], 1
    %28 = vsyncpa %s27, 0
    loop: start=0, step=1, limit=4
    $region2: #{tpu_custom_call.1} parent=1 // loop_pre_header
      _
    $region3: #{tpu_custom_call.1} parent=1 // loop_header
      %s30 = sphi 0, %s34
      %p31 = scmp.ge.s32.totalorder %s30, 4
      %s40 = sphi 0, %s42
      %s43 = sphi 0, %s40
      %s44 = sphi 0, %s43
      %s60 = sphi 0, %s44
      %s64 = sphi 0, %s64
      %s66 = sphi 0, %s64
      %s67 = sphi 0, %s66
      %s81 = sphi 0, %s67
      %s85 = sphi 0, %s85
      %s87 = sphi 0, %s85
      %s88 = sphi 0, %s87
      %s102 = sphi 0, %s88
      %s106 = sphi 0, %s106
      %s108 = sphi 0, %s106
      %s109 = sphi 0, %s108
      %s123 = sphi 0, %s109
      %s127 = sphi 0, %s127
      %s129 = sphi 0, %s127
      %s130 = sphi 0, %s129
      %s144 = sphi 0, %s130
      %s148 = sphi 0, %s148
      %s150 = sphi 0, %s148
      %s151 = sphi 0, %s150
      %s165 = sphi 0, %s151
      %s169 = sphi 0, %s169
      %s171 = sphi 0, %s169
      %s172 = sphi 0, %s171
      %s186 = sphi 0, %s172
      %s190 = sphi 0, %s190
      %s192 = sphi 0, %s190
      %s193 = sphi 0, %s192
      %s207 = sphi 0, %s193
      %s211 = sphi 0, %s211
      %s213 = sphi 0, %s211
      %s214 = sphi 0, %s213
      %s228 = sphi 0, %s214
      %s232 = sphi 0, %s232
      %s234 = sphi 0, %s232
      %s235 = sphi 0, %s234
      %s249 = sphi 0, %s235
      %s253 = sphi 0, %s253
      %s255 = sphi 0, %s253
      %s256 = sphi 0, %s255
      %s270 = sphi 0, %s256
      %s274 = sphi 0, %s274
      %s276 = sphi 0, %s274
      %s277 = sphi 0, %s276
      %s291 = sphi 0, %s277
      %s295 = sphi 0, %s295
      %s297 = sphi 0, %s295
      %s298 = sphi 0, %s297
      %s312 = sphi 0, %s298
      %s316 = sphi 0, %s316
      %s318 = sphi 0, %s316
      %s319 = sphi 0, %s318
      %s333 = sphi 0, %s319
      %s337 = sphi 0, %s337
      %s339 = sphi 0, %s337
      %s340 = sphi 0, %s339
      %s354 = sphi 0, %s340
      %s360 = sphi 0, %s362
      %s363 = sphi 0, %s360
      %s364 = sphi 0, %s363
      %s380 = sphi 0, %s364
    $region4: #{tpu_custom_call.1} parent=1 // loop_header_branch
      %33 = sbr.rel (%p31) target = $region8
    $region5: #{tpu_custom_call.1} parent=1 // loop_body
      %s35 = ssub.s32 %s30, 1
      %s36 = ssub.s32 %s30, 2
      %s37 = sadd.s32 %s30, 1
      %s38 = ssub.s32 %s30, %s37
      %p39 = scmp.eq.s32.totalorder %s38, 0
      %s41 = sadd.s32 %s40, 1
      %s42 = scalar_select %p39, %s40, %s41
      %p45 = pneg %p39
      %p46 = scmp.eq.s32.totalorder %s30, 1
      %p47 = por %p45, %p46
      %p48 = scmp.ne.s32.totalorder %s40, %s43
      %p49 = scmp.eq.s32.totalorder %s30, 0
      %p50 = por %p48, %p49
      %p51 = scmp.ne.s32.totalorder %s40, %s43
      %p52 = scmp.eq.s32.totalorder %s35, 1
      %p53 = por %p51, %p52
      %p54 = scmp.ne.s32.totalorder %s43, %s44
      %p55 = scmp.eq.s32.totalorder %s35, 0
      %p56 = por %p54, %p55
      %p57 = scmp.ne.s32.totalorder %s43, %s44
      %p58 = scmp.eq.s32.totalorder %s36, 1
      %p59 = por %p57, %p58
      %p61 = scmp.ne.s32.totalorder %s44, %s60
      %p62 = scmp.eq.s32.totalorder %s36, 0
      %p63 = por %p61, %p62
      %s65 = sadd.s32 %s64, 1
      %p68 = scmp.eq.s32.totalorder %s30, 1
      %p69 = scmp.ne.s32.totalorder %s64, %s66
      %p70 = scmp.eq.s32.totalorder %s30, 0
      %p71 = por %p69, %p70
      %p72 = scmp.ne.s32.totalorder %s64, %s66
      %p73 = scmp.eq.s32.totalorder %s35, 1
      %p74 = por %p72, %p73
      %p75 = scmp.ne.s32.totalorder %s66, %s67
      %p76 = scmp.eq.s32.totalorder %s35, 0
      %p77 = por %p75, %p76
      %p78 = scmp.ne.s32.totalorder %s66, %s67
      %p79 = scmp.eq.s32.totalorder %s36, 1
      %p80 = por %p78, %p79
      %p82 = scmp.ne.s32.totalorder %s67, %s81
      %p83 = scmp.eq.s32.totalorder %s36, 0
      %p84 = por %p82, %p83
      %s86 = sadd.s32 %s85, 1
      %p89 = scmp.eq.s32.totalorder %s30, 1
      %p90 = scmp.ne.s32.totalorder %s85, %s87
      %p91 = scmp.eq.s32.totalorder %s30, 0
      %p92 = por %p90, %p91
      %p93 = scmp.ne.s32.totalorder %s85, %s87
      %p94 = scmp.eq.s32.totalorder %s35, 1
      %p95 = por %p93, %p94
      %p96 = scmp.ne.s32.totalorder %s87, %s88
      %p97 = scmp.eq.s32.totalorder %s35, 0
      %p98 = por %p96, %p97
      %p99 = scmp.ne.s32.totalorder %s87, %s88
      %p100 = scmp.eq.s32.totalorder %s36, 1
      %p101 = por %p99, %p100
      %p103 = scmp.ne.s32.totalorder %s88, %s102
      %p104 = scmp.eq.s32.totalorder %s36, 0
      %p105 = por %p103, %p104
      %s107 = sadd.s32 %s106, 1
      %p110 = scmp.eq.s32.totalorder %s30, 1
      %p111 = scmp.ne.s32.totalorder %s106, %s108
      %p112 = scmp.eq.s32.totalorder %s30, 0
      %p113 = por %p111, %p112
      %p114 = scmp.ne.s32.totalorder %s106, %s108
      %p115 = scmp.eq.s32.totalorder %s35, 1
      %p116 = por %p114, %p115
      %p117 = scmp.ne.s32.totalorder %s108, %s109
      %p118 = scmp.eq.s32.totalorder %s35, 0
      %p119 = por %p117, %p118
      %p120 = scmp.ne.s32.totalorder %s108, %s109
      %p121 = scmp.eq.s32.totalorder %s36, 1
      %p122 = por %p120, %p121
      %p124 = scmp.ne.s32.totalorder %s109, %s123
      %p125 = scmp.eq.s32.totalorder %s36, 0
      %p126 = por %p124, %p125
      %s128 = sadd.s32 %s127, 1
      %p131 = scmp.eq.s32.totalorder %s30, 1
      %p132 = scmp.ne.s32.totalorder %s127, %s129
      %p133 = scmp.eq.s32.totalorder %s30, 0
      %p134 = por %p132, %p133
      %p135 = scmp.ne.s32.totalorder %s127, %s129
      %p136 = scmp.eq.s32.totalorder %s35, 1
      %p137 = por %p135, %p136
      %p138 = scmp.ne.s32.totalorder %s129, %s130
      %p139 = scmp.eq.s32.totalorder %s35, 0
      %p140 = por %p138, %p139
      %p141 = scmp.ne.s32.totalorder %s129, %s130
      %p142 = scmp.eq.s32.totalorder %s36, 1
      %p143 = por %p141, %p142
      %p145 = scmp.ne.s32.totalorder %s130, %s144
      %p146 = scmp.eq.s32.totalorder %s36, 0
      %p147 = por %p145, %p146
      %s149 = sadd.s32 %s148, 1
      %p152 = scmp.eq.s32.totalorder %s30, 1
      %p153 = scmp.ne.s32.totalorder %s148, %s150
      %p154 = scmp.eq.s32.totalorder %s30, 0
      %p155 = por %p153, %p154
      %p156 = scmp.ne.s32.totalorder %s148, %s150
      %p157 = scmp.eq.s32.totalorder %s35, 1
      %p158 = por %p156, %p157
      %p159 = scmp.ne.s32.totalorder %s150, %s151
      %p160 = scmp.eq.s32.totalorder %s35, 0
      %p161 = por %p159, %p160
      %p162 = scmp.ne.s32.totalorder %s150, %s151
      %p163 = scmp.eq.s32.totalorder %s36, 1
      %p164 = por %p162, %p163
      %p166 = scmp.ne.s32.totalorder %s151, %s165
      %p167 = scmp.eq.s32.totalorder %s36, 0
      %p168 = por %p166, %p167
      %s170 = sadd.s32 %s169, 1
      %p173 = scmp.eq.s32.totalorder %s30, 1
      %p174 = scmp.ne.s32.totalorder %s169, %s171
      %p175 = scmp.eq.s32.totalorder %s30, 0
      %p176 = por %p174, %p175
      %p177 = scmp.ne.s32.totalorder %s169, %s171
      %p178 = scmp.eq.s32.totalorder %s35, 1
      %p179 = por %p177, %p178
      %p180 = scmp.ne.s32.totalorder %s171, %s172
      %p181 = scmp.eq.s32.totalorder %s35, 0
      %p182 = por %p180, %p181
      %p183 = scmp.ne.s32.totalorder %s171, %s172
      %p184 = scmp.eq.s32.totalorder %s36, 1
      %p185 = por %p183, %p184
      %p187 = scmp.ne.s32.totalorder %s172, %s186
      %p188 = scmp.eq.s32.totalorder %s36, 0
      %p189 = por %p187, %p188
      %s191 = sadd.s32 %s190, 1
      %p194 = scmp.eq.s32.totalorder %s30, 1
      %p195 = scmp.ne.s32.totalorder %s190, %s192
      %p196 = scmp.eq.s32.totalorder %s30, 0
      %p197 = por %p195, %p196
      %p198 = scmp.ne.s32.totalorder %s190, %s192
      %p199 = scmp.eq.s32.totalorder %s35, 1
      %p200 = por %p198, %p199
      %p201 = scmp.ne.s32.totalorder %s192, %s193
      %p202 = scmp.eq.s32.totalorder %s35, 0
      %p203 = por %p201, %p202
      %p204 = scmp.ne.s32.totalorder %s192, %s193
      %p205 = scmp.eq.s32.totalorder %s36, 1
      %p206 = por %p204, %p205
      %p208 = scmp.ne.s32.totalorder %s193, %s207
      %p209 = scmp.eq.s32.totalorder %s36, 0
      %p210 = por %p208, %p209
      %s212 = sadd.s32 %s211, 1
      %p215 = scmp.eq.s32.totalorder %s30, 1
      %p216 = scmp.ne.s32.totalorder %s211, %s213
      %p217 = scmp.eq.s32.totalorder %s30, 0
      %p218 = por %p216, %p217
      %p219 = scmp.ne.s32.totalorder %s211, %s213
      %p220 = scmp.eq.s32.totalorder %s35, 1
      %p221 = por %p219, %p220
      %p222 = scmp.ne.s32.totalorder %s213, %s214
      %p223 = scmp.eq.s32.totalorder %s35, 0
      %p224 = por %p222, %p223
      %p225 = scmp.ne.s32.totalorder %s213, %s214
      %p226 = scmp.eq.s32.totalorder %s36, 1
      %p227 = por %p225, %p226
      %p229 = scmp.ne.s32.totalorder %s214, %s228
      %p230 = scmp.eq.s32.totalorder %s36, 0
      %p231 = por %p229, %p230
      %s233 = sadd.s32 %s232, 1
      %p236 = scmp.eq.s32.totalorder %s30, 1
      %p237 = scmp.ne.s32.totalorder %s232, %s234
      %p238 = scmp.eq.s32.totalorder %s30, 0
      %p239 = por %p237, %p238
      %p240 = scmp.ne.s32.totalorder %s232, %s234
      %p241 = scmp.eq.s32.totalorder %s35, 1
      %p242 = por %p240, %p241
      %p243 = scmp.ne.s32.totalorder %s234, %s235
      %p244 = scmp.eq.s32.totalorder %s35, 0
      %p245 = por %p243, %p244
      %p246 = scmp.ne.s32.totalorder %s234, %s235
      %p247 = scmp.eq.s32.totalorder %s36, 1
      %p248 = por %p246, %p247
      %p250 = scmp.ne.s32.totalorder %s235, %s249
      %p251 = scmp.eq.s32.totalorder %s36, 0
      %p252 = por %p250, %p251
      %s254 = sadd.s32 %s253, 1
      %p257 = scmp.eq.s32.totalorder %s30, 1
      %p258 = scmp.ne.s32.totalorder %s253, %s255
      %p259 = scmp.eq.s32.totalorder %s30, 0
      %p260 = por %p258, %p259
      %p261 = scmp.ne.s32.totalorder %s253, %s255
      %p262 = scmp.eq.s32.totalorder %s35, 1
      %p263 = por %p261, %p262
      %p264 = scmp.ne.s32.totalorder %s255, %s256
      %p265 = scmp.eq.s32.totalorder %s35, 0
      %p266 = por %p264, %p265
      %p267 = scmp.ne.s32.totalorder %s255, %s256
      %p268 = scmp.eq.s32.totalorder %s36, 1
      %p269 = por %p267, %p268
      %p271 = scmp.ne.s32.totalorder %s256, %s270
      %p272 = scmp.eq.s32.totalorder %s36, 0
      %p273 = por %p271, %p272
      %s275 = sadd.s32 %s274, 1
      %p278 = scmp.eq.s32.totalorder %s30, 1
      %p279 = scmp.ne.s32.totalorder %s274, %s276
      %p280 = scmp.eq.s32.totalorder %s30, 0
      %p281 = por %p279, %p280
      %p282 = scmp.ne.s32.totalorder %s274, %s276
      %p283 = scmp.eq.s32.totalorder %s35, 1
      %p284 = por %p282, %p283
      %p285 = scmp.ne.s32.totalorder %s276, %s277
      %p286 = scmp.eq.s32.totalorder %s35, 0
      %p287 = por %p285, %p286
      %p288 = scmp.ne.s32.totalorder %s276, %s277
      %p289 = scmp.eq.s32.totalorder %s36, 1
      %p290 = por %p288, %p289
      %p292 = scmp.ne.s32.totalorder %s277, %s291
      %p293 = scmp.eq.s32.totalorder %s36, 0
      %p294 = por %p292, %p293
      %s296 = sadd.s32 %s295, 1
      %p299 = scmp.eq.s32.totalorder %s30, 1
      %p300 = scmp.ne.s32.totalorder %s295, %s297
      %p301 = scmp.eq.s32.totalorder %s30, 0
      %p302 = por %p300, %p301
      %p303 = scmp.ne.s32.totalorder %s295, %s297
      %p304 = scmp.eq.s32.totalorder %s35, 1
      %p305 = por %p303, %p304
      %p306 = scmp.ne.s32.totalorder %s297, %s298
      %p307 = scmp.eq.s32.totalorder %s35, 0
      %p308 = por %p306, %p307
      %p309 = scmp.ne.s32.totalorder %s297, %s298
      %p310 = scmp.eq.s32.totalorder %s36, 1
      %p311 = por %p309, %p310
      %p313 = scmp.ne.s32.totalorder %s298, %s312
      %p314 = scmp.eq.s32.totalorder %s36, 0
      %p315 = por %p313, %p314
      %s317 = sadd.s32 %s316, 1
      %p320 = scmp.eq.s32.totalorder %s30, 1
      %p321 = scmp.ne.s32.totalorder %s316, %s318
      %p322 = scmp.eq.s32.totalorder %s30, 0
      %p323 = por %p321, %p322
      %p324 = scmp.ne.s32.totalorder %s316, %s318
      %p325 = scmp.eq.s32.totalorder %s35, 1
      %p326 = por %p324, %p325
      %p327 = scmp.ne.s32.totalorder %s318, %s319
      %p328 = scmp.eq.s32.totalorder %s35, 0
      %p329 = por %p327, %p328
      %p330 = scmp.ne.s32.totalorder %s318, %s319
      %p331 = scmp.eq.s32.totalorder %s36, 1
      %p332 = por %p330, %p331
      %p334 = scmp.ne.s32.totalorder %s319, %s333
      %p335 = scmp.eq.s32.totalorder %s36, 0
      %p336 = por %p334, %p335
      %s338 = sadd.s32 %s337, 1
      %p341 = scmp.eq.s32.totalorder %s30, 1
      %p342 = scmp.ne.s32.totalorder %s337, %s339
      %p343 = scmp.eq.s32.totalorder %s30, 0
      %p344 = por %p342, %p343
      %p345 = scmp.ne.s32.totalorder %s337, %s339
      %p346 = scmp.eq.s32.totalorder %s35, 1
      %p347 = por %p345, %p346
      %p348 = scmp.ne.s32.totalorder %s339, %s340
      %p349 = scmp.eq.s32.totalorder %s35, 0
      %p350 = por %p348, %p349
      %p351 = scmp.ne.s32.totalorder %s339, %s340
      %p352 = scmp.eq.s32.totalorder %s36, 1
      %p353 = por %p351, %p352
      %p355 = scmp.ne.s32.totalorder %s340, %s354
      %p356 = scmp.eq.s32.totalorder %s36, 0
      %p357 = por %p355, %p356
      %s358 = ssub.s32 %s30, %s37
      %p359 = scmp.eq.s32.totalorder %s358, 0
      %s361 = sadd.s32 %s360, 1
      %s362 = scalar_select %p359, %s360, %s361
      %p365 = pneg %p359
      %p366 = scmp.eq.s32.totalorder %s30, 1
      %p367 = por %p365, %p366
      %p368 = scmp.ne.s32.totalorder %s360, %s363
      %p369 = scmp.eq.s32.totalorder %s30, 0
      %p370 = por %p368, %p369
      %p371 = scmp.ne.s32.totalorder %s360, %s363
      %p372 = scmp.eq.s32.totalorder %s35, 1
      %p373 = por %p371, %p372
      %p374 = scmp.ne.s32.totalorder %s363, %s364
      %p375 = scmp.eq.s32.totalorder %s35, 0
      %p376 = por %p374, %p375
      %p377 = scmp.ne.s32.totalorder %s363, %s364
      %p378 = scmp.eq.s32.totalorder %s36, 1
      %p379 = por %p377, %p378
      %p381 = scmp.ne.s32.totalorder %s364, %s380
      %p382 = scmp.eq.s32.totalorder %s36, 0
      %p383 = por %p381, %p382
      %p384 = scmp.le.s32.totalorder 1, %s30
      %p385 = scmp.lt.s32.totalorder %s30, 3
      %p386 = pnand %p384, %p385
      %p387 = pneg %p386
      // Predicated region
      $region9: #{tpu_custom_call.1} parent=5 // pred_check
        _
      $region10: #{tpu_custom_call.1} parent=5 // pred_check_branch
        %389 = sbr.rel (%p386) target = $region12
      $region11: #{tpu_custom_call.1} parent=5 // pred_region
        %s390 = ssub.s32 %s30, 1
        // Predicated region
        $region13: #{tpu_custom_call.1} parent=11 // pred_check
          %p391 = pneg %p77
        $region14: #{tpu_custom_call.1} parent=11 // pred_check_branch
          %393 = sbr.rel (%p391) target = $region16
        $region15: #{tpu_custom_call.1} parent=11 // pred_region
          _
        $region16: #{tpu_custom_call.1} parent=11 // pred_fallthru
          _
        // Predicated region
        $region17: #{tpu_custom_call.1} parent=11 // pred_check
          %p394 = pneg %p98
        $region18: #{tpu_custom_call.1} parent=11 // pred_check_branch
          %396 = sbr.rel (%p394) target = $region20
        $region19: #{tpu_custom_call.1} parent=11 // pred_region
          %s398 = ssub.s32 1024, 1024
          %399 = vsyncadd [#allocation6], %s398
          %s400 = sshll.u32 [#allocation5], 4
          %s401 = int_to_ptr.vmem [resolvable:$true] %s400
          %406 = dma.hbm_to_vmem [thread:$0]  %s2, 1024, %s401, [#allocation6], 64, 64, 4
        $region20: #{tpu_custom_call.1} parent=11 // pred_fallthru
          _
        // Predicated region
        $region21: #{tpu_custom_call.1} parent=11 // pred_check
          %p407 = pneg %p119
        $region22: #{tpu_custom_call.1} parent=11 // pred_check_branch
          %409 = sbr.rel (%p407) target = $region24
        $region23: #{tpu_custom_call.1} parent=11 // pred_region
          _
        $region24: #{tpu_custom_call.1} parent=11 // pred_fallthru
          _
        // Predicated region
        $region25: #{tpu_custom_call.1} parent=11 // pred_check
          %p410 = pneg %p140
        $region26: #{tpu_custom_call.1} parent=11 // pred_check_branch
          %412 = sbr.rel (%p410) target = $region28
        $region27: #{tpu_custom_call.1} parent=11 // pred_region
          %s414 = ssub.s32 2048, 2048
          %415 = vsyncadd [#allocation6], %s414
          %s416 = sshll.u32 [#allocation7], 4
          %s417 = int_to_ptr.vmem [resolvable:$true] %s416
          %422 = dma.hbm_to_vmem [thread:$0]  %s4, 2048, %s417, [#allocation6], 128, 128, 8
        $region28: #{tpu_custom_call.1} parent=11 // pred_fallthru
          _
        // Predicated region
        $region29: #{tpu_custom_call.1} parent=11 // pred_check
          %p423 = pneg %p161
        $region30: #{tpu_custom_call.1} parent=11 // pred_check_branch
          %425 = sbr.rel (%p423) target = $region32
        $region31: #{tpu_custom_call.1} parent=11 // pred_region
          %s427 = ssub.s32 2048, 2048
          %428 = vsyncadd [#allocation9], %s427
          %s429 = sshll.u32 [#allocation8], 4
          %s430 = int_to_ptr.vmem [resolvable:$true] %s429
          %435 = dma.hbm_to_vmem [thread:$0]  %s5, 2048, %s430, [#allocation9], 128, 128, 8
        $region32: #{tpu_custom_call.1} parent=11 // pred_fallthru
          _
        // Predicated region
        $region33: #{tpu_custom_call.1} parent=11 // pred_check
          %p436 = pneg %p182
        $region34: #{tpu_custom_call.1} parent=11 // pred_check_branch
          %438 = sbr.rel (%p436) target = $region36
        $region35: #{tpu_custom_call.1} parent=11 // pred_region
          _
        $region36: #{tpu_custom_call.1} parent=11 // pred_fallthru
          _
        // Predicated region
        $region37: #{tpu_custom_call.1} parent=11 // pred_check
          %p439 = pneg %p203
        $region38: #{tpu_custom_call.1} parent=11 // pred_check_branch
          %441 = sbr.rel (%p439) target = $region40
        $region39: #{tpu_custom_call.1} parent=11 // pred_region
          %s443 = ssub.s32 2048, 2048
          %444 = vsyncadd [#allocation9], %s443
          %s445 = sshll.u32 [#allocation10], 4
          %s446 = int_to_ptr.vmem [resolvable:$true] %s445
          %451 = dma.hbm_to_vmem [thread:$0]  %s7, 2048, %s446, [#allocation9], 64, 64, 4
        $region40: #{tpu_custom_call.1} parent=11 // pred_fallthru
          _
        // Predicated region
        $region41: #{tpu_custom_call.1} parent=11 // pred_check
          %p452 = pneg %p224
        $region42: #{tpu_custom_call.1} parent=11 // pred_check_branch
          %454 = sbr.rel (%p452) target = $region44
        $region43: #{tpu_custom_call.1} parent=11 // pred_region
          _
        $region44: #{tpu_custom_call.1} parent=11 // pred_fallthru
          _
        // Predicated region
        $region45: #{tpu_custom_call.1} parent=11 // pred_check
          %p455 = pneg %p245
        $region46: #{tpu_custom_call.1} parent=11 // pred_check_branch
          %457 = sbr.rel (%p455) target = $region48
        $region47: #{tpu_custom_call.1} parent=11 // pred_region
          %s459 = ssub.s32 1024, 1024
          %460 = vsyncadd [#allocation12], %s459
          %s461 = sshll.u32 [#allocation11], 4
          %s462 = int_to_ptr.vmem [resolvable:$true] %s461
          %467 = dma.hbm_to_vmem [thread:$0]  %s9, 1024, %s462, [#allocation12], 64, 64, 4
        $region48: #{tpu_custom_call.1} parent=11 // pred_fallthru
          _
        // Predicated region
        $region49: #{tpu_custom_call.1} parent=11 // pred_check
          %p468 = pneg %p266
        $region50: #{tpu_custom_call.1} parent=11 // pred_check_branch
          %470 = sbr.rel (%p468) target = $region52
        $region51: #{tpu_custom_call.1} parent=11 // pred_region
          _
        $region52: #{tpu_custom_call.1} parent=11 // pred_fallthru
          _
        // Predicated region
        $region53: #{tpu_custom_call.1} parent=11 // pred_check
          %p471 = pneg %p287
        $region54: #{tpu_custom_call.1} parent=11 // pred_check_branch
          %473 = sbr.rel (%p471) target = $region56
        $region55: #{tpu_custom_call.1} parent=11 // pred_region
          _
        $region56: #{tpu_custom_call.1} parent=11 // pred_fallthru
          _
        // Predicated region
        $region57: #{tpu_custom_call.1} parent=11 // pred_check
          %p474 = pneg %p308
        $region58: #{tpu_custom_call.1} parent=11 // pred_check_branch
          %476 = sbr.rel (%p474) target = $region60
        $region59: #{tpu_custom_call.1} parent=11 // pred_region
          _
        $region60: #{tpu_custom_call.1} parent=11 // pred_fallthru
          _
        // Predicated region
        $region61: #{tpu_custom_call.1} parent=11 // pred_check
          %p477 = pneg %p329
        $region62: #{tpu_custom_call.1} parent=11 // pred_check_branch
          %479 = sbr.rel (%p477) target = $region64
        $region63: #{tpu_custom_call.1} parent=11 // pred_region
          %s481 = ssub.s32 1024, 1024
          %482 = vsyncadd [#allocation12], %s481
          %s483 = sshll.u32 [#allocation13], 4
          %s484 = int_to_ptr.vmem [resolvable:$true] %s483
          %489 = dma.hbm_to_vmem [thread:$0]  %s13, 1024, %s484, [#allocation12], 64, 64, 4
        $region64: #{tpu_custom_call.1} parent=11 // pred_fallthru
          _
        // Predicated region
        $region65: #{tpu_custom_call.1} parent=11 // pred_check
          %p490 = pneg %p350
        $region66: #{tpu_custom_call.1} parent=11 // pred_check_branch
          %492 = sbr.rel (%p490) target = $region68
        $region67: #{tpu_custom_call.1} parent=11 // pred_region
          _
        $region68: #{tpu_custom_call.1} parent=11 // pred_fallthru
          _
      $region12: #{tpu_custom_call.1} parent=5 // pred_fallthru
        _
      %p493 = scmp.lt.s32.totalorder %s30, 2
      // Predicated region
      $region69: #{tpu_custom_call.1} parent=5 // pred_check
        %p494 = pneg %p493
      $region70: #{tpu_custom_call.1} parent=5 // pred_check_branch
        %496 = sbr.rel (%p494) target = $region72
      $region71: #{tpu_custom_call.1} parent=5 // pred_region
        // Predicated region
        $region73: #{tpu_custom_call.1} parent=71 // pred_check
          %p497 = pneg %p50
        $region74: #{tpu_custom_call.1} parent=71 // pred_check_branch
          %499 = sbr.rel (%p497) target = $region76
        $region75: #{tpu_custom_call.1} parent=71 // pred_region
          %s500 = sand.u32 %s40, 1
          %s501 = scalar_lea.sflag [#allocation3], %s500
          %s502 = sand.u32 %s40, 1
          %s503 = smul.addr %s502, 8
          %s504 = scalar_lea.vmem [#allocation2], %s503
          %s506 = ssub.s32 128, 128
          %507 = vsyncadd %s501, %s506
          %s508 = smul.addr %s30, 128
          %s509 = scalar_lea.hbm %s0, %s508
          %s511 = sshll.u32 %s504, 4
          %s512 = int_to_ptr.vmem [resolvable:$true] %s511
          %514 = dma.hbm_to_vmem [thread:$0]  %s509, 128, %s512, %s501
        $region76: #{tpu_custom_call.1} parent=71 // pred_fallthru
          _
      $region72: #{tpu_custom_call.1} parent=5 // pred_fallthru
        _
      %p515 = scmp.le.s32.totalorder 1, %s30
      %p516 = scmp.lt.s32.totalorder %s30, 3
      %p517 = pnand %p515, %p516
      %p518 = pneg %p517
      // Predicated region
      $region77: #{tpu_custom_call.1} parent=5 // pred_check
        _
      $region78: #{tpu_custom_call.1} parent=5 // pred_check_branch
        %520 = sbr.rel (%p517) target = $region80
      $region79: #{tpu_custom_call.1} parent=5 // pred_region
        %s521 = ssub.s32 %s30, 1
        %s522 = sand.u32 %s43, 1
        %s523 = scalar_lea.sflag [#allocation3], %s522
        %s524 = sand.u32 %s43, 1
        %s525 = smul.addr %s524, 8
        %s526 = scalar_lea.vmem [#allocation2], %s525
        // Predicated region
        $region81: #{tpu_custom_call.1} parent=79 // pred_check
          %p527 = pneg %p56
        $region82: #{tpu_custom_call.1} parent=79 // pred_check_branch
          %529 = sbr.rel (%p527) target = $region84
        $region83: #{tpu_custom_call.1} parent=79 // pred_region
          %530 = dma.done %s523, 128
        $region84: #{tpu_custom_call.1} parent=79 // pred_fallthru
          _
        // Predicated region
        $region85: #{tpu_custom_call.1} parent=79 // pred_check
          %p531 = pneg %p98
        $region86: #{tpu_custom_call.1} parent=79 // pred_check_branch
          %533 = sbr.rel (%p531) target = $region88
        $region87: #{tpu_custom_call.1} parent=79 // pred_region
          %534 = dma.done [#allocation6], 1024
        $region88: #{tpu_custom_call.1} parent=79 // pred_fallthru
          _
        // Predicated region
        $region89: #{tpu_custom_call.1} parent=79 // pred_check
          %p535 = pneg %p140
        $region90: #{tpu_custom_call.1} parent=79 // pred_check_branch
          %537 = sbr.rel (%p535) target = $region92
        $region91: #{tpu_custom_call.1} parent=79 // pred_region
          %538 = dma.done [#allocation6], 2048
        $region92: #{tpu_custom_call.1} parent=79 // pred_fallthru
          _
        // Predicated region
        $region93: #{tpu_custom_call.1} parent=79 // pred_check
          %p539 = pneg %p161
        $region94: #{tpu_custom_call.1} parent=79 // pred_check_branch
          %541 = sbr.rel (%p539) target = $region96
        $region95: #{tpu_custom_call.1} parent=79 // pred_region
          %542 = dma.done [#allocation9], 2048
        $region96: #{tpu_custom_call.1} parent=79 // pred_fallthru
          _
        // Predicated region
        $region97: #{tpu_custom_call.1} parent=79 // pred_check
          %p543 = pneg %p203
        $region98: #{tpu_custom_call.1} parent=79 // pred_check_branch
          %545 = sbr.rel (%p543) target = $region100
        $region99: #{tpu_custom_call.1} parent=79 // pred_region
          %546 = dma.done [#allocation9], 2048
        $region100: #{tpu_custom_call.1} parent=79 // pred_fallthru
          _
        // Predicated region
        $region101: #{tpu_custom_call.1} parent=79 // pred_check
          %p547 = pneg %p245
        $region102: #{tpu_custom_call.1} parent=79 // pred_check_branch
          %549 = sbr.rel (%p547) target = $region104
        $region103: #{tpu_custom_call.1} parent=79 // pred_region
          %550 = dma.done [#allocation12], 1024
        $region104: #{tpu_custom_call.1} parent=79 // pred_fallthru
          _
        // Predicated region
        $region105: #{tpu_custom_call.1} parent=79 // pred_check
          %p551 = pneg %p329
        $region106: #{tpu_custom_call.1} parent=79 // pred_check_branch
          %553 = sbr.rel (%p551) target = $region108
        $region107: #{tpu_custom_call.1} parent=79 // pred_region
          %554 = dma.done [#allocation12], 1024
        $region108: #{tpu_custom_call.1} parent=79 // pred_fallthru
          _
        %s555 = sand.u32 %s43, 1
        %s556 = scalar_lea.sflag [#allocation3], %s555
        %s557 = sand.u32 %s43, 1
        %s558 = smul.addr %s557, 8
        %s559 = scalar_lea.vmem [#allocation2], %s558
        %p560 = pneg %p56
        %p561 = pneg %p53
        %p562 = pneg %p77
        %p563 = pneg %p74
        %p564 = pneg %p98
        %p565 = pneg %p95
        %p566 = pneg %p119
        %p567 = pneg %p116
        %p568 = pneg %p140
        %p569 = pneg %p137
        %p570 = pneg %p161
        %p571 = pneg %p158
        %p572 = pneg %p182
        %p573 = pneg %p179
        %p574 = pneg %p203
        %p575 = pneg %p200
        %p576 = pneg %p224
        %p577 = pneg %p221
        %p578 = pneg %p245
        %p579 = pneg %p242
        %p580 = pneg %p266
        %p581 = pneg %p263
        %p582 = pneg %p287
        %p583 = pneg %p284
        %p584 = pneg %p308
        %p585 = pneg %p305
        %p586 = pneg %p329
        %p587 = pneg %p326
        %p588 = pneg %p350
        %p589 = pneg %p347
        %p590 = pneg %p376
        %p591 = pneg %p373
        %s592 = sand.u32 %s363, 1
        %s593 = scalar_lea.sflag [#allocation4], %s592
        %s594 = sand.u32 %s363, 1
        %s595 = smul.addr %s594, 8
        %s596 = scalar_lea.vmem [#allocation14], %s595
        %v598 = vld [vmem:[%s526] sm:$0xff]
        %v599 = vld [vmem:[%s1] sm:$0x1]
        %v600 = vld [vmem:[#allocation5] sm:$0xf]
        %v601 = vld [vmem:[#allocation5 + $0x4] sm:$0xf]
        %v602 = vld [vmem:[#allocation5 + $0x8] sm:$0xf]
        %v603 = vld [vmem:[#allocation5 + $0xc] sm:$0xf]
        %v604 = vld [vmem:[#allocation5 + $0x10] sm:$0xf]
        %v605 = vld [vmem:[#allocation5 + $0x14] sm:$0xf]
        %v606 = vld [vmem:[#allocation5 + $0x18] sm:$0xf]
        %v607 = vld [vmem:[#allocation5 + $0x1c] sm:$0xf]
        %v608 = vld [vmem:[#allocation5 + $0x20] sm:$0xf]
        %v609 = vld [vmem:[#allocation5 + $0x24] sm:$0xf]
        %v610 = vld [vmem:[#allocation5 + $0x28] sm:$0xf]
        %v611 = vld [vmem:[#allocation5 + $0x2c] sm:$0xf]
        %v612 = vld [vmem:[#allocation5 + $0x30] sm:$0xf]
        %v613 = vld [vmem:[#allocation5 + $0x34] sm:$0xf]
        %v614 = vld [vmem:[#allocation5 + $0x38] sm:$0xf]
        %v615 = vld [vmem:[#allocation5 + $0x3c] sm:$0xf]
        %v616 = vmul.f32 %v598, %v598
        %617 = vadd.xlane.f32.xlu0 %v616
        %v618 = vpop.xlane.xlu0 %617
        %v619 = vmul.f32 %v618, 0.03125
        %v620 = vadd.f32 %v619, 1e-08
        %v621 = vrsqrt.pop %v620
        %v622 = vmul.f32 %v598, %v621
        %v624 = vlaneseq
        %v625 = vshrl.u32 %v624, 7
        %v626 = vsub.s32 0, %v625
        %v627 = vrot.slane %v599, %v626
        %v629 = vmul.f32 %v622, %v627
        %v630 = vand.u32 2147483647, %v629
        %631 = vmax.xlane.f32.xlu0 %v630
        %v632 = vpop.xlane.xlu0 %631
        %v633 = vmax.f32 %v632, 1e-05
        %v634 = vrcp.pop %v633
        %v635 = vmul.f32 127.0, %v634
        %v636 = vmul.f32 %v629, %v635
        %v637 = vround.ne.pseudo %v636
        %v638 = vmax.f32 %v637, -128.0
        %v639 = vmin.f32 %v638, 127.0
        %v640 = vpack.c.bf16 %v639, %v639
        %v641 = vmul.f32 %v633, 0.007874016
        %v658 = vunpack.c.l.b16 %v600
        %v659 = vunpack.c.l.b16 %v601
        %v660 = vunpack.c.l.b16 %v602
        %v661 = vunpack.c.l.b16 %v603
        %v662 = vunpack.c.l.b16 %v604
        %v663 = vunpack.c.l.b16 %v605
        %v664 = vunpack.c.l.b16 %v606
        %v665 = vunpack.c.l.b16 %v607
        %v666 = vunpack.c.l.b16 %v608
        %v667 = vunpack.c.l.b16 %v609
        %v668 = vunpack.c.l.b16 %v610
        %v669 = vunpack.c.l.b16 %v611
        %v670 = vunpack.c.l.b16 %v612
        %v671 = vunpack.c.l.b16 %v613
        %v672 = vunpack.c.l.b16 %v614
        %v673 = vunpack.c.l.b16 %v615
        %v674 = vpack.c.b16 %v659, %v658
        %v675 = vpack.c.b16 %v661, %v660
        %v676 = vpack.c.b16 %v663, %v662
        %v677 = vpack.c.b16 %v665, %v664
        %v678 = vpack.c.b16 %v667, %v666
        %v679 = vpack.c.b16 %v669, %v668
        %v680 = vpack.c.b16 %v671, %v670
        %v681 = vpack.c.b16 %v673, %v672
        %690 = vmatprep.subr.bf16.mxu0 0
        %691 = vmatpush1.bf16.msra.mxu0 %v681
        %692 = vmatprep.subr.bf16.mxu0 0
        %693 = vmatpush1.bf16.msra.mxu0 %v680
        %694 = vmatprep.subr.bf16.mxu0 0
        %695 = vmatpush1.bf16.msra.mxu0 %v679
        %696 = vmatprep.subr.bf16.mxu0 0
        %697 = vmatpush1.bf16.msra.mxu0 %v678
        %698 = vmatprep.subr.bf16.mxu0 0
        %699 = vmatpush1.bf16.msra.mxu0 %v677
        %700 = vmatprep.subr.bf16.mxu0 0
        %701 = vmatpush1.bf16.msra.mxu0 %v676
        %702 = vmatprep.subr.bf16.mxu0 0
        %703 = vmatpush1.bf16.msra.mxu0 %v675
        %704 = vmatprep.subr.bf16.mxu0 0
        %705 = vmatpush1.bf16.msra.mxu0 %v674
        %706 = vmatprep.subr.bf16.mxu0 0
        %707 = vmatpush2.bf16.msra.mxu0 0
        %708 = vmatprep.subr.bf16.mxu0 0
        %709 = vmatpush2.bf16.msra.mxu0 0
        %710 = vmatprep.subr.bf16.mxu0 0
        %711 = vmatpush2.bf16.msra.mxu0 0
        %712 = vmatprep.subr.bf16.mxu0 0
        %713 = vmatpush2.bf16.msra.mxu0 0
        %714 = vmatprep.subr.bf16.mxu0 0
        %715 = vmatpush2.bf16.msra.mxu0 0
        %716 = vmatprep.subr.bf16.mxu0 0
        %717 = vmatpush2.bf16.msra.mxu0 0
        %718 = vmatprep.subr.bf16.mxu0 0
        %719 = vmatpush2.bf16.msra.mxu0 0
        %720 = vmatprep.subr.bf16.mxu0 0
        %721 = vmatpush2.bf16.msra.mxu0 0
        %722 = vmatprep.mubr.bf16.mxu0 0
        %723 = vmatmul.mubr.bf16.gmra.mxu0 %v640
        %v724 = vpop.f32.mrf.mxu0
        %v725 = vadd.f32 0.0, %v724
        %v726 = vpop.f32.mrf.mxu0
        %v727 = vpop.f32.mrf.mxu0
        %v728 = vpop.f32.mrf.mxu0
        %729 = vdwg.mxu0
        %v730 = vmul.f32 %v725, %v641
        %v731 = vld [vmem:[%s3] sm:$0x1]
        %v732 = vmul.f32 %v730, %v730
        %733 = vadd.xlane.f32.xlu0 %v732
        %v734 = vpop.xlane.xlu0 %733
        %v735 = vmul.f32 %v734, 0.03125
        %v736 = vadd.f32 %v735, 1e-08
        %v737 = vrsqrt.pop %v736
        %v738 = vmul.f32 %v730, %v737
        %v740 = vlaneseq
        %v741 = vshrl.u32 %v740, 7
        %v742 = vsub.s32 0, %v741
        %v743 = vrot.slane %v731, %v742
        %v745 = vmul.f32 %v738, %v743
        %v746 = vand.u32 2147483647, %v745
        %747 = vmax.xlane.f32.xlu0 %v746
        %v748 = vpop.xlane.xlu0 %747
        %v749 = vmax.f32 %v748, 1e-05
        %v750 = vrcp.pop %v749
        %v751 = vmul.f32 127.0, %v750
        %v752 = vmul.f32 %v745, %v751
        %v753 = vround.ne.pseudo %v752
        %v754 = vmax.f32 %v753, -128.0
        %v755 = vmin.f32 %v754, 127.0
        %v756 = vpack.c.bf16 %v755, %v755
        %v757 = vmul.f32 %v749, 0.007874016
        %v758 = vld [vmem:[#allocation7] sm:$0xff]
        %v759 = vld [vmem:[#allocation7 + $0x8] sm:$0xff]
        %v760 = vld [vmem:[#allocation7 + $0x10] sm:$0xff]
        %v761 = vld [vmem:[#allocation7 + $0x18] sm:$0xff]
        %v762 = vld [vmem:[#allocation7 + $0x20] sm:$0xff]
        %v763 = vld [vmem:[#allocation7 + $0x28] sm:$0xff]
        %v764 = vld [vmem:[#allocation7 + $0x30] sm:$0xff]
        %v765 = vld [vmem:[#allocation7 + $0x38] sm:$0xff]
        %v766 = vld [vmem:[#allocation7 + $0x40] sm:$0xff]
        %v767 = vld [vmem:[#allocation7 + $0x48] sm:$0xff]
        %v768 = vld [vmem:[#allocation7 + $0x50] sm:$0xff]
        %v769 = vld [vmem:[#allocation7 + $0x58] sm:$0xff]
        %v770 = vld [vmem:[#allocation7 + $0x60] sm:$0xff]
        %v771 = vld [vmem:[#allocation7 + $0x68] sm:$0xff]
        %v772 = vld [vmem:[#allocation7 + $0x70] sm:$0xff]
        %v773 = vld [vmem:[#allocation7 + $0x78] sm:$0xff]
        %v790 = vunpack.c.l.b16 %v758
        %v791 = vunpack.c.h.b16 %v758
        %v792 = vunpack.c.l.b16 %v759
        %v793 = vunpack.c.h.b16 %v759
        %v794 = vunpack.c.l.b16 %v760
        %v795 = vunpack.c.h.b16 %v760
        %v796 = vunpack.c.l.b16 %v761
        %v797 = vunpack.c.h.b16 %v761
        %v798 = vunpack.c.l.b16 %v762
        %v799 = vunpack.c.h.b16 %v762
        %v800 = vunpack.c.l.b16 %v763
        %v801 = vunpack.c.h.b16 %v763
        %v802 = vunpack.c.l.b16 %v764
        %v803 = vunpack.c.h.b16 %v764
        %v804 = vunpack.c.l.b16 %v765
        %v805 = vunpack.c.h.b16 %v765
        %v806 = vunpack.c.l.b16 %v766
        %v807 = vunpack.c.h.b16 %v766
        %v808 = vunpack.c.l.b16 %v767
        %v809 = vunpack.c.h.b16 %v767
        %v810 = vunpack.c.l.b16 %v768
        %v811 = vunpack.c.h.b16 %v768
        %v812 = vunpack.c.l.b16 %v769
        %v813 = vunpack.c.h.b16 %v769
        %v814 = vunpack.c.l.b16 %v770
        %v815 = vunpack.c.h.b16 %v770
        %v816 = vunpack.c.l.b16 %v771
        %v817 = vunpack.c.h.b16 %v771
        %v818 = vunpack.c.l.b16 %v772
        %v819 = vunpack.c.h.b16 %v772
        %v820 = vunpack.c.l.b16 %v773
        %v821 = vunpack.c.h.b16 %v773
        %v822 = vpack.c.b16 %v792, %v790
        %v823 = vpack.c.b16 %v793, %v791
        %v824 = vpack.c.b16 %v796, %v794
        %v825 = vpack.c.b16 %v797, %v795
        %v826 = vpack.c.b16 %v800, %v798
        %v827 = vpack.c.b16 %v801, %v799
        %v828 = vpack.c.b16 %v804, %v802
        %v829 = vpack.c.b16 %v805, %v803
        %v830 = vpack.c.b16 %v808, %v806
        %v831 = vpack.c.b16 %v809, %v807
        %v832 = vpack.c.b16 %v812, %v810
        %v833 = vpack.c.b16 %v813, %v811
        %v834 = vpack.c.b16 %v816, %v814
        %v835 = vpack.c.b16 %v817, %v815
        %v836 = vpack.c.b16 %v820, %v818
        %v837 = vpack.c.b16 %v821, %v819
        %854 = vmatprep.subr.bf16.mxu0 %v837
        %855 = vmatpush1.bf16.msra.mxu0 %v836
        %856 = vmatprep.subr.bf16.mxu0 %v835
        %857 = vmatpush1.bf16.msra.mxu0 %v834
        %858 = vmatprep.subr.bf16.mxu0 %v833
        %859 = vmatpush1.bf16.msra.mxu0 %v832
        %860 = vmatprep.subr.bf16.mxu0 %v831
        %861 = vmatpush1.bf16.msra.mxu0 %v830
        %862 = vmatprep.subr.bf16.mxu0 %v829
        %863 = vmatpush1.bf16.msra.mxu0 %v828
        %864 = vmatprep.subr.bf16.mxu0 %v827
        %865 = vmatpush1.bf16.msra.mxu0 %v826
        %866 = vmatprep.subr.bf16.mxu0 %v825
        %867 = vmatpush1.bf16.msra.mxu0 %v824
        %868 = vmatprep.subr.bf16.mxu0 %v823
        %869 = vmatpush1.bf16.msra.mxu0 %v822
        %870 = vmatprep.subr.bf16.mxu0 0
        %871 = vmatpush2.bf16.msra.mxu0 0
        %872 = vmatprep.subr.bf16.mxu0 0
        %873 = vmatpush2.bf16.msra.mxu0 0
        %874 = vmatprep.subr.bf16.mxu0 0
        %875 = vmatpush2.bf16.msra.mxu0 0
        %876 = vmatprep.subr.bf16.mxu0 0
        %877 = vmatpush2.bf16.msra.mxu0 0
        %878 = vmatprep.subr.bf16.mxu0 0
        %879 = vmatpush2.bf16.msra.mxu0 0
        %880 = vmatprep.subr.bf16.mxu0 0
        %881 = vmatpush2.bf16.msra.mxu0 0
        %882 = vmatprep.subr.bf16.mxu0 0
        %883 = vmatpush2.bf16.msra.mxu0 0
        %884 = vmatprep.subr.bf16.mxu0 0
        %885 = vmatpush2.bf16.msra.mxu0 0
        %886 = vmatprep.mubr.bf16.mxu0 0
        %887 = vmatmul.mubr.bf16.gmra.mxu0 %v756
        %v888 = vpop.f32.mrf.mxu0
        %v889 = vadd.f32 0.0, %v888
        %v890 = vpop.f32.mrf.mxu0
        %v891 = vadd.f32 0.0, %v890
        %v892 = vpop.f32.mrf.mxu0
        %v893 = vpop.f32.mrf.mxu0
        %894 = vdwg.mxu0
        %v895 = vmul.f32 %v889, %v757
        %v896 = vmul.f32 %v891, %v757
        %v897 = vld [vmem:[#allocation8] sm:$0xff]
        %v898 = vld [vmem:[#allocation8 + $0x8] sm:$0xff]
        %v899 = vld [vmem:[#allocation8 + $0x10] sm:$0xff]
        %v900 = vld [vmem:[#allocation8 + $0x18] sm:$0xff]
        %v901 = vld [vmem:[#allocation8 + $0x20] sm:$0xff]
        %v902 = vld [vmem:[#allocation8 + $0x28] sm:$0xff]
        %v903 = vld [vmem:[#allocation8 + $0x30] sm:$0xff]
        %v904 = vld [vmem:[#allocation8 + $0x38] sm:$0xff]
        %v905 = vld [vmem:[#allocation8 + $0x40] sm:$0xff]
        %v906 = vld [vmem:[#allocation8 + $0x48] sm:$0xff]
        %v907 = vld [vmem:[#allocation8 + $0x50] sm:$0xff]
        %v908 = vld [vmem:[#allocation8 + $0x58] sm:$0xff]
        %v909 = vld [vmem:[#allocation8 + $0x60] sm:$0xff]
        %v910 = vld [vmem:[#allocation8 + $0x68] sm:$0xff]
        %v911 = vld [vmem:[#allocation8 + $0x70] sm:$0xff]
        %v912 = vld [vmem:[#allocation8 + $0x78] sm:$0xff]
        %v929 = vunpack.c.l.b16 %v897
        %v930 = vunpack.c.h.b16 %v897
        %v931 = vunpack.c.l.b16 %v898
        %v932 = vunpack.c.h.b16 %v898
        %v933 = vunpack.c.l.b16 %v899
        %v934 = vunpack.c.h.b16 %v899
        %v935 = vunpack.c.l.b16 %v900
        %v936 = vunpack.c.h.b16 %v900
        %v937 = vunpack.c.l.b16 %v901
        %v938 = vunpack.c.h.b16 %v901
        %v939 = vunpack.c.l.b16 %v902
        %v940 = vunpack.c.h.b16 %v902
        %v941 = vunpack.c.l.b16 %v903
        %v942 = vunpack.c.h.b16 %v903
        %v943 = vunpack.c.l.b16 %v904
        %v944 = vunpack.c.h.b16 %v904
        %v945 = vunpack.c.l.b16 %v905
        %v946 = vunpack.c.h.b16 %v905
        %v947 = vunpack.c.l.b16 %v906
        %v948 = vunpack.c.h.b16 %v906
        %v949 = vunpack.c.l.b16 %v907
        %v950 = vunpack.c.h.b16 %v907
        %v951 = vunpack.c.l.b16 %v908
        %v952 = vunpack.c.h.b16 %v908
        %v953 = vunpack.c.l.b16 %v909
        %v954 = vunpack.c.h.b16 %v909
        %v955 = vunpack.c.l.b16 %v910
        %v956 = vunpack.c.h.b16 %v910
        %v957 = vunpack.c.l.b16 %v911
        %v958 = vunpack.c.h.b16 %v911
        %v959 = vunpack.c.l.b16 %v912
        %v960 = vunpack.c.h.b16 %v912
        %v961 = vpack.c.b16 %v931, %v929
        %v962 = vpack.c.b16 %v932, %v930
        %v963 = vpack.c.b16 %v935, %v933
        %v964 = vpack.c.b16 %v936, %v934
        %v965 = vpack.c.b16 %v939, %v937
        %v966 = vpack.c.b16 %v940, %v938
        %v967 = vpack.c.b16 %v943, %v941
        %v968 = vpack.c.b16 %v944, %v942
        %v969 = vpack.c.b16 %v947, %v945
        %v970 = vpack.c.b16 %v948, %v946
        %v971 = vpack.c.b16 %v951, %v949
        %v972 = vpack.c.b16 %v952, %v950
        %v973 = vpack.c.b16 %v955, %v953
        %v974 = vpack.c.b16 %v956, %v954
        %v975 = vpack.c.b16 %v959, %v957
        %v976 = vpack.c.b16 %v960, %v958
        %993 = vmatprep.subr.bf16.mxu0 %v976
        %994 = vmatpush1.bf16.msra.mxu0 %v975
        %995 = vmatprep.subr.bf16.mxu0 %v974
        %996 = vmatpush1.bf16.msra.mxu0 %v973
        %997 = vmatprep.subr.bf16.mxu0 %v972
        %998 = vmatpush1.bf16.msra.mxu0 %v971
        %999 = vmatprep.subr.bf16.mxu0 %v970
        %1000 = vmatpush1.bf16.msra.mxu0 %v969
        %1001 = vmatprep.subr.bf16.mxu0 %v968
        %1002 = vmatpush1.bf16.msra.mxu0 %v967
        %1003 = vmatprep.subr.bf16.mxu0 %v966
        %1004 = vmatpush1.bf16.msra.mxu0 %v965
        %1005 = vmatprep.subr.bf16.mxu0 %v964
        %1006 = vmatpush1.bf16.msra.mxu0 %v963
        %1007 = vmatprep.subr.bf16.mxu0 %v962
        %1008 = vmatpush1.bf16.msra.mxu0 %v961
        %1009 = vmatprep.subr.bf16.mxu0 0
        %1010 = vmatpush2.bf16.msra.mxu0 0
        %1011 = vmatprep.subr.bf16.mxu0 0
        %1012 = vmatpush2.bf16.msra.mxu0 0
        %1013 = vmatprep.subr.bf16.mxu0 0
        %1014 = vmatpush2.bf16.msra.mxu0 0
        %1015 = vmatprep.subr.bf16.mxu0 0
        %1016 = vmatpush2.bf16.msra.mxu0 0
        %1017 = vmatprep.subr.bf16.mxu0 0
        %1018 = vmatpush2.bf16.msra.mxu0 0
        %1019 = vmatprep.subr.bf16.mxu0 0
        %1020 = vmatpush2.bf16.msra.mxu0 0
        %1021 = vmatprep.subr.bf16.mxu0 0
        %1022 = vmatpush2.bf16.msra.mxu0 0
        %1023 = vmatprep.subr.bf16.mxu0 0
        %1024 = vmatpush2.bf16.msra.mxu0 0
        %1025 = vmatprep.mubr.bf16.mxu0 0
        %1026 = vmatmul.mubr.bf16.gmra.mxu0 %v756
        %v1027 = vpop.f32.mrf.mxu0
        %v1028 = vadd.f32 0.0, %v1027
        %v1029 = vpop.f32.mrf.mxu0
        %v1030 = vadd.f32 0.0, %v1029
        %v1031 = vpop.f32.mrf.mxu0
        %v1032 = vpop.f32.mrf.mxu0
        %1033 = vdwg.mxu0
        %v1034 = vmul.f32 %v1028, %v757
        %v1035 = vmul.f32 %v1030, %v757
        %v1036 = vxor.u32 %v895, 2147483648
        %v1037 = vxor.u32 %v896, 2147483648
        %v1038 = vmul.f32 %v1036, 1.442695
        %v1039 = vpow.pop %v1038
        %v1040 = vmul.f32 %v1037, 1.442695
        %v1041 = vpow.pop %v1040
        %v1042 = vadd.f32 %v1039, 1.0
        %v1043 = vadd.f32 %v1041, 1.0
        %v1044 = vrcp.pop %v1042
        %v1045 = vmul.f32 1.0, %v1044
        %v1046 = vrcp.pop %v1043
        %v1047 = vmul.f32 1.0, %v1046
        %v1048 = vmul.f32 %v895, %v1045
        %v1049 = vmul.f32 %v896, %v1047
        %v1050 = vmul.f32 %v1048, %v1034
        %v1051 = vmul.f32 %v1049, %v1035
        %v1052 = vld [vmem:[%s6] sm:$0x3]
        %v1053 = vld [vmem:[#allocation10] sm:$0xf]
        %v1054 = vld [vmem:[#allocation10 + $0x4] sm:$0xf]
        %v1055 = vld [vmem:[#allocation10 + $0x8] sm:$0xf]
        %v1056 = vld [vmem:[#allocation10 + $0xc] sm:$0xf]
        %v1057 = vld [vmem:[#allocation10 + $0x10] sm:$0xf]
        %v1058 = vld [vmem:[#allocation10 + $0x14] sm:$0xf]
        %v1059 = vld [vmem:[#allocation10 + $0x18] sm:$0xf]
        %v1060 = vld [vmem:[#allocation10 + $0x1c] sm:$0xf]
        %v1061 = vld [vmem:[#allocation10 + $0x20] sm:$0xf]
        %v1062 = vld [vmem:[#allocation10 + $0x24] sm:$0xf]
        %v1063 = vld [vmem:[#allocation10 + $0x28] sm:$0xf]
        %v1064 = vld [vmem:[#allocation10 + $0x2c] sm:$0xf]
        %v1065 = vld [vmem:[#allocation10 + $0x30] sm:$0xf]
        %v1066 = vld [vmem:[#allocation10 + $0x34] sm:$0xf]
        %v1067 = vld [vmem:[#allocation10 + $0x38] sm:$0xf]
        %v1068 = vld [vmem:[#allocation10 + $0x3c] sm:$0xf]
        %v1069 = vld [vmem:[#allocation10 + $0x40] sm:$0xf]
        %v1070 = vld [vmem:[#allocation10 + $0x44] sm:$0xf]
        %v1071 = vld [vmem:[#allocation10 + $0x48] sm:$0xf]
        %v1072 = vld [vmem:[#allocation10 + $0x4c] sm:$0xf]
        %v1073 = vld [vmem:[#allocation10 + $0x50] sm:$0xf]
        %v1074 = vld [vmem:[#allocation10 + $0x54] sm:$0xf]
        %v1075 = vld [vmem:[#allocation10 + $0x58] sm:$0xf]
        %v1076 = vld [vmem:[#allocation10 + $0x5c] sm:$0xf]
        %v1077 = vld [vmem:[#allocation10 + $0x60] sm:$0xf]
        %v1078 = vld [vmem:[#allocation10 + $0x64] sm:$0xf]
        %v1079 = vld [vmem:[#allocation10 + $0x68] sm:$0xf]
        %v1080 = vld [vmem:[#allocation10 + $0x6c] sm:$0xf]
        %v1081 = vld [vmem:[#allocation10 + $0x70] sm:$0xf]
        %v1082 = vld [vmem:[#allocation10 + $0x74] sm:$0xf]
        %v1083 = vld [vmem:[#allocation10 + $0x78] sm:$0xf]
        %v1084 = vld [vmem:[#allocation10 + $0x7c] sm:$0xf]
        %v1085 = vmul.f32 %v1050, %v1050
        %v1086 = vmul.f32 %v1051, %v1051
        %v1087 = vadd.f32 %v1085, %v1086
        %1088 = vadd.xlane.f32.xlu0 %v1087
        %v1089 = vpop.xlane.xlu0 %1088
        %v1090 = vmul.f32 %v1089, 0.00390625
        %v1091 = vadd.f32 %v1090, 1e-08
        %v1092 = vrsqrt.pop %v1091
        %v1093 = vmul.f32 %v1050, %v1092
        %v1094 = vmul.f32 %v1051, %v1092
        %v1096 = vlaneseq
        %v1097 = vshrl.u32 %v1096, 7
        %v1098 = vsub.s32 0, %v1097
        %v1099 = vrot.slane %v1052, %v1098
        %v1100 = vlaneseq
        %v1101 = vshrl.u32 %v1100, 7
        %v1102 = vsub.s32 1, %v1101
        %v1103 = vrot.slane %v1052, %v1102
        %v1106 = vmul.f32 %v1093, %v1099
        %v1107 = vmul.f32 %v1094, %v1103
        %v1108 = vand.u32 2147483647, %v1106
        %v1109 = vand.u32 2147483647, %v1107
        %v1110 = vmax.f32 %v1108, %v1109
        %1111 = vmax.xlane.f32.xlu0 %v1110
        %v1112 = vpop.xlane.xlu0 %1111
        %v1113 = vmax.f32 %v1112, 1e-05
        %v1114 = vrcp.pop %v1113
        %v1115 = vmul.f32 127.0, %v1114
        %v1116 = vmul.f32 %v1106, %v1115
        %v1117 = vmul.f32 %v1107, %v1115
        %v1118 = vround.ne.pseudo %v1116
        %v1119 = vround.ne.pseudo %v1117
        %v1120 = vmax.f32 %v1118, -128.0
        %v1121 = vmax.f32 %v1119, -128.0
        %v1122 = vmin.f32 %v1120, 127.0
        %v1123 = vmin.f32 %v1121, 127.0
        %v1124 = vpack.c.bf16 %v1122, %v1122
        %v1125 = vpack.c.bf16 %v1123, %v1123
        %v1126 = vmul.f32 %v1113, 0.007874016
        %v1159 = vunpack.c.l.b16 %v1053
        %v1160 = vunpack.c.l.b16 %v1054
        %v1161 = vunpack.c.l.b16 %v1055
        %v1162 = vunpack.c.l.b16 %v1056
        %v1163 = vunpack.c.l.b16 %v1057
        %v1164 = vunpack.c.l.b16 %v1058
        %v1165 = vunpack.c.l.b16 %v1059
        %v1166 = vunpack.c.l.b16 %v1060
        %v1167 = vunpack.c.l.b16 %v1061
        %v1168 = vunpack.c.l.b16 %v1062
        %v1169 = vunpack.c.l.b16 %v1063
        %v1170 = vunpack.c.l.b16 %v1064
        %v1171 = vunpack.c.l.b16 %v1065
        %v1172 = vunpack.c.l.b16 %v1066
        %v1173 = vunpack.c.l.b16 %v1067
        %v1174 = vunpack.c.l.b16 %v1068
        %v1175 = vunpack.c.l.b16 %v1069
        %v1176 = vunpack.c.l.b16 %v1070
        %v1177 = vunpack.c.l.b16 %v1071
        %v1178 = vunpack.c.l.b16 %v1072
        %v1179 = vunpack.c.l.b16 %v1073
        %v1180 = vunpack.c.l.b16 %v1074
        %v1181 = vunpack.c.l.b16 %v1075
        %v1182 = vunpack.c.l.b16 %v1076
        %v1183 = vunpack.c.l.b16 %v1077
        %v1184 = vunpack.c.l.b16 %v1078
        %v1185 = vunpack.c.l.b16 %v1079
        %v1186 = vunpack.c.l.b16 %v1080
        %v1187 = vunpack.c.l.b16 %v1081
        %v1188 = vunpack.c.l.b16 %v1082
        %v1189 = vunpack.c.l.b16 %v1083
        %v1190 = vunpack.c.l.b16 %v1084
        %v1191 = vpack.c.b16 %v1160, %v1159
        %v1192 = vpack.c.b16 %v1162, %v1161
        %v1193 = vpack.c.b16 %v1164, %v1163
        %v1194 = vpack.c.b16 %v1166, %v1165
        %v1195 = vpack.c.b16 %v1168, %v1167
        %v1196 = vpack.c.b16 %v1170, %v1169
        %v1197 = vpack.c.b16 %v1172, %v1171
        %v1198 = vpack.c.b16 %v1174, %v1173
        %v1199 = vpack.c.b16 %v1176, %v1175
        %v1200 = vpack.c.b16 %v1178, %v1177
        %v1201 = vpack.c.b16 %v1180, %v1179
        %v1202 = vpack.c.b16 %v1182, %v1181
        %v1203 = vpack.c.b16 %v1184, %v1183
        %v1204 = vpack.c.b16 %v1186, %v1185
        %v1205 = vpack.c.b16 %v1188, %v1187
        %v1206 = vpack.c.b16 %v1190, %v1189
        %1223 = vmatprep.subr.bf16.mxu0 0
        %1224 = vmatpush1.bf16.msra.mxu0 %v1198
        %1225 = vmatprep.subr.bf16.mxu0 0
        %1226 = vmatpush1.bf16.msra.mxu0 %v1197
        %1227 = vmatprep.subr.bf16.mxu0 0
        %1228 = vmatpush1.bf16.msra.mxu0 %v1196
        %1229 = vmatprep.subr.bf16.mxu0 0
        %1230 = vmatpush1.bf16.msra.mxu0 %v1195
        %1231 = vmatprep.subr.bf16.mxu0 0
        %1232 = vmatpush1.bf16.msra.mxu0 %v1194
        %1233 = vmatprep.subr.bf16.mxu0 0
        %1234 = vmatpush1.bf16.msra.mxu0 %v1193
        %1235 = vmatprep.subr.bf16.mxu0 0
        %1236 = vmatpush1.bf16.msra.mxu0 %v1192
        %1237 = vmatprep.subr.bf16.mxu0 0
        %1238 = vmatpush1.bf16.msra.mxu0 %v1191
        %1239 = vmatprep.subr.bf16.mxu0 0
        %1240 = vmatpush2.bf16.msra.mxu0 %v1206
        %1241 = vmatprep.subr.bf16.mxu0 0
        %1242 = vmatpush2.bf16.msra.mxu0 %v1205
        %1243 = vmatprep.subr.bf16.mxu0 0
        %1244 = vmatpush2.bf16.msra.mxu0 %v1204
        %1245 = vmatprep.subr.bf16.mxu0 0
        %1246 = vmatpush2.bf16.msra.mxu0 %v1203
        %1247 = vmatprep.subr.bf16.mxu0 0
        %1248 = vmatpush2.bf16.msra.mxu0 %v1202
        %1249 = vmatprep.subr.bf16.mxu0 0
        %1250 = vmatpush2.bf16.msra.mxu0 %v1201
        %1251 = vmatprep.subr.bf16.mxu0 0
        %1252 = vmatpush2.bf16.msra.mxu0 %v1200
        %1253 = vmatprep.subr.bf16.mxu0 0
        %1254 = vmatpush2.bf16.msra.mxu0 %v1199
        %1255 = vmatprep.mubr.bf16.mxu0 %v1125
        %1256 = vmatmul.mubr.bf16.gmra.mxu0 %v1124
        %v1257 = vpop.f32.mrf.mxu0
        %v1258 = vadd.f32 0.0, %v1257
        %v1259 = vpop.f32.mrf.mxu0
        %v1260 = vpop.f32.mrf.mxu0
        %v1261 = vpop.f32.mrf.mxu0
        %1262 = vdwg.mxu0
        %v1263 = vmul.f32 %v1258, %v1126
        %v1264 = vld [vmem:[%s8] sm:$0x1]
        %v1265 = vld [vmem:[#allocation11] sm:$0xf]
        %v1266 = vld [vmem:[#allocation11 + $0x4] sm:$0xf]
        %v1267 = vld [vmem:[#allocation11 + $0x8] sm:$0xf]
        %v1268 = vld [vmem:[#allocation11 + $0xc] sm:$0xf]
        %v1269 = vld [vmem:[#allocation11 + $0x10] sm:$0xf]
        %v1270 = vld [vmem:[#allocation11 + $0x14] sm:$0xf]
        %v1271 = vld [vmem:[#allocation11 + $0x18] sm:$0xf]
        %v1272 = vld [vmem:[#allocation11 + $0x1c] sm:$0xf]
        %v1273 = vld [vmem:[#allocation11 + $0x20] sm:$0xf]
        %v1274 = vld [vmem:[#allocation11 + $0x24] sm:$0xf]
        %v1275 = vld [vmem:[#allocation11 + $0x28] sm:$0xf]
        %v1276 = vld [vmem:[#allocation11 + $0x2c] sm:$0xf]
        %v1277 = vld [vmem:[#allocation11 + $0x30] sm:$0xf]
        %v1278 = vld [vmem:[#allocation11 + $0x34] sm:$0xf]
        %v1279 = vld [vmem:[#allocation11 + $0x38] sm:$0xf]
        %v1280 = vld [vmem:[#allocation11 + $0x3c] sm:$0xf]
        %v1281 = vld [vmem:[%s10] sm:$0x1]
        %v1282 = vmul.f32 %v1263, %v1263
        %1283 = vadd.xlane.f32.xlu0 %v1282
        %v1284 = vpop.xlane.xlu0 %1283
        %v1285 = vmul.f32 %v1284, 0.03125
        %v1286 = vadd.f32 %v1285, 1e-08
        %v1287 = vrsqrt.pop %v1286
        %v1288 = vmul.f32 %v1263, %v1287
        %v1290 = vlaneseq
        %v1291 = vshrl.u32 %v1290, 7
        %v1292 = vsub.s32 0, %v1291
        %v1293 = vrot.slane %v1264, %v1292
        %v1295 = vmul.f32 %v1288, %v1293
        %v1296 = vand.u32 2147483647, %v1295
        %1297 = vmax.xlane.f32.xlu0 %v1296
        %v1298 = vpop.xlane.xlu0 %1297
        %v1299 = vmax.f32 %v1298, 1e-05
        %v1300 = vrcp.pop %v1299
        %v1301 = vmul.f32 127.0, %v1300
        %v1302 = vmul.f32 %v1295, %v1301
        %v1303 = vround.ne.pseudo %v1302
        %v1304 = vmax.f32 %v1303, -128.0
        %v1305 = vmin.f32 %v1304, 127.0
        %v1306 = vpack.c.bf16 %v1305, %v1305
        %v1307 = vmul.f32 %v1299, 0.007874016
        %v1324 = vunpack.c.l.b16 %v1265
        %v1325 = vunpack.c.l.b16 %v1266
        %v1326 = vunpack.c.l.b16 %v1267
        %v1327 = vunpack.c.l.b16 %v1268
        %v1328 = vunpack.c.l.b16 %v1269
        %v1329 = vunpack.c.l.b16 %v1270
        %v1330 = vunpack.c.l.b16 %v1271
        %v1331 = vunpack.c.l.b16 %v1272
        %v1332 = vunpack.c.l.b16 %v1273
        %v1333 = vunpack.c.l.b16 %v1274
        %v1334 = vunpack.c.l.b16 %v1275
        %v1335 = vunpack.c.l.b16 %v1276
        %v1336 = vunpack.c.l.b16 %v1277
        %v1337 = vunpack.c.l.b16 %v1278
        %v1338 = vunpack.c.l.b16 %v1279
        %v1339 = vunpack.c.l.b16 %v1280
        %v1340 = vpack.c.b16 %v1325, %v1324
        %v1341 = vpack.c.b16 %v1327, %v1326
        %v1342 = vpack.c.b16 %v1329, %v1328
        %v1343 = vpack.c.b16 %v1331, %v1330
        %v1344 = vpack.c.b16 %v1333, %v1332
        %v1345 = vpack.c.b16 %v1335, %v1334
        %v1346 = vpack.c.b16 %v1337, %v1336
        %v1347 = vpack.c.b16 %v1339, %v1338
        %1356 = vmatprep.subr.bf16.mxu0 0
        %1357 = vmatpush1.bf16.msra.mxu0 %v1347
        %1358 = vmatprep.subr.bf16.mxu0 0
        %1359 = vmatpush1.bf16.msra.mxu0 %v1346
        %1360 = vmatprep.subr.bf16.mxu0 0
        %1361 = vmatpush1.bf16.msra.mxu0 %v1345
        %1362 = vmatprep.subr.bf16.mxu0 0
        %1363 = vmatpush1.bf16.msra.mxu0 %v1344
        %1364 = vmatprep.subr.bf16.mxu0 0
        %1365 = vmatpush1.bf16.msra.mxu0 %v1343
        %1366 = vmatprep.subr.bf16.mxu0 0
        %1367 = vmatpush1.bf16.msra.mxu0 %v1342
        %1368 = vmatprep.subr.bf16.mxu0 0
        %1369 = vmatpush1.bf16.msra.mxu0 %v1341
        %1370 = vmatprep.subr.bf16.mxu0 0
        %1371 = vmatpush1.bf16.msra.mxu0 %v1340
        %1372 = vmatprep.subr.bf16.mxu0 0
        %1373 = vmatpush2.bf16.msra.mxu0 0
        %1374 = vmatprep.subr.bf16.mxu0 0
        %1375 = vmatpush2.bf16.msra.mxu0 0
        %1376 = vmatprep.subr.bf16.mxu0 0
        %1377 = vmatpush2.bf16.msra.mxu0 0
        %1378 = vmatprep.subr.bf16.mxu0 0
        %1379 = vmatpush2.bf16.msra.mxu0 0
        %1380 = vmatprep.subr.bf16.mxu0 0
        %1381 = vmatpush2.bf16.msra.mxu0 0
        %1382 = vmatprep.subr.bf16.mxu0 0
        %1383 = vmatpush2.bf16.msra.mxu0 0
        %1384 = vmatprep.subr.bf16.mxu0 0
        %1385 = vmatpush2.bf16.msra.mxu0 0
        %1386 = vmatprep.subr.bf16.mxu0 0
        %1387 = vmatpush2.bf16.msra.mxu0 0
        %1388 = vmatprep.mubr.bf16.mxu0 0
        %1389 = vmatmul.mubr.bf16.gmra.mxu0 %v1306
        %v1390 = vpop.f32.mrf.mxu0
        %v1391 = vadd.f32 0.0, %v1390
        %v1392 = vpop.f32.mrf.mxu0
        %v1393 = vpop.f32.mrf.mxu0
        %v1394 = vpop.f32.mrf.mxu0
        %1395 = vdwg.mxu0
        %v1396 = vmul.f32 %v1391, %v1307
        %v1398 = vlaneseq
        %v1399 = vshrl.u32 %v1398, 7
        %v1400 = vsub.s32 0, %v1399
        %v1401 = vrot.slane %v1281, %v1400
        %v1403 = vadd.f32 %v1396, %v1401
        %v1404 = vld [vmem:[%s11] sm:$0x1]
        %v1405 = vmul.f32 %v1403, %v1403
        %1406 = vadd.xlane.f32.xlu0 %v1405
        %v1407 = vpop.xlane.xlu0 %1406
        %v1408 = vmul.f32 %v1407, 0.015625
        %v1409 = vadd.f32 %v1408, 1e-06
        %v1410 = vrsqrt.pop %v1409
        %v1411 = vmul.f32 %v1403, %v1410
        %v1413 = vlaneseq
        %v1414 = vshrl.u32 %v1413, 7
        %v1415 = vsub.s32 0, %v1414
        %v1416 = vrot.slane %v1404, %v1415
        %v1418 = vmul.f32 %v1411, %v1416
        %v1419 = vld [vmem:[%s12] sm:$0x1]
        %v1420 = vld [vmem:[#allocation13] sm:$0xf]
        %v1421 = vld [vmem:[#allocation13 + $0x4] sm:$0xf]
        %v1422 = vld [vmem:[#allocation13 + $0x8] sm:$0xf]
        %v1423 = vld [vmem:[#allocation13 + $0xc] sm:$0xf]
        %v1424 = vld [vmem:[#allocation13 + $0x10] sm:$0xf]
        %v1425 = vld [vmem:[#allocation13 + $0x14] sm:$0xf]
        %v1426 = vld [vmem:[#allocation13 + $0x18] sm:$0xf]
        %v1427 = vld [vmem:[#allocation13 + $0x1c] sm:$0xf]
        %v1428 = vld [vmem:[#allocation13 + $0x20] sm:$0xf]
        %v1429 = vld [vmem:[#allocation13 + $0x24] sm:$0xf]
        %v1430 = vld [vmem:[#allocation13 + $0x28] sm:$0xf]
        %v1431 = vld [vmem:[#allocation13 + $0x2c] sm:$0xf]
        %v1432 = vld [vmem:[#allocation13 + $0x30] sm:$0xf]
        %v1433 = vld [vmem:[#allocation13 + $0x34] sm:$0xf]
        %v1434 = vld [vmem:[#allocation13 + $0x38] sm:$0xf]
        %v1435 = vld [vmem:[#allocation13 + $0x3c] sm:$0xf]
        %v1436 = vld [vmem:[%s14] sm:$0x1]
        %v1437 = vmul.f32 %v1418, %v1418
        %1438 = vadd.xlane.f32.xlu0 %v1437
        %v1439 = vpop.xlane.xlu0 %1438
        %v1440 = vmul.f32 %v1439, 0.015625
        %v1441 = vadd.f32 %v1440, 1e-08
        %v1442 = vrsqrt.pop %v1441
        %v1443 = vmul.f32 %v1418, %v1442
        %v1445 = vlaneseq
        %v1446 = vshrl.u32 %v1445, 7
        %v1447 = vsub.s32 0, %v1446
        %v1448 = vrot.slane %v1419, %v1447
        %v1450 = vmul.f32 %v1443, %v1448
        %v1451 = vand.u32 2147483647, %v1450
        %1452 = vmax.xlane.f32.xlu0 %v1451
        %v1453 = vpop.xlane.xlu0 %1452
        %v1454 = vmax.f32 %v1453, 1e-05
        %v1455 = vrcp.pop %v1454
        %v1456 = vmul.f32 127.0, %v1455
        %v1457 = vmul.f32 %v1450, %v1456
        %v1458 = vround.ne.pseudo %v1457
        %v1459 = vmax.f32 %v1458, -128.0
        %v1460 = vmin.f32 %v1459, 127.0
        %v1461 = vpack.c.bf16 %v1460, %v1460
        %v1462 = vmul.f32 %v1454, 0.007874016
        %v1479 = vunpack.c.l.b16 %v1420
        %v1480 = vunpack.c.l.b16 %v1421
        %v1481 = vunpack.c.l.b16 %v1422
        %v1482 = vunpack.c.l.b16 %v1423
        %v1483 = vunpack.c.l.b16 %v1424
        %v1484 = vunpack.c.l.b16 %v1425
        %v1485 = vunpack.c.l.b16 %v1426
        %v1486 = vunpack.c.l.b16 %v1427
        %v1487 = vunpack.c.l.b16 %v1428
        %v1488 = vunpack.c.l.b16 %v1429
        %v1489 = vunpack.c.l.b16 %v1430
        %v1490 = vunpack.c.l.b16 %v1431
        %v1491 = vunpack.c.l.b16 %v1432
        %v1492 = vunpack.c.l.b16 %v1433
        %v1493 = vunpack.c.l.b16 %v1434
        %v1494 = vunpack.c.l.b16 %v1435
        %v1495 = vpack.c.b16 %v1480, %v1479
        %v1496 = vpack.c.b16 %v1482, %v1481
        %v1497 = vpack.c.b16 %v1484, %v1483
        %v1498 = vpack.c.b16 %v1486, %v1485
        %v1499 = vpack.c.b16 %v1488, %v1487
        %v1500 = vpack.c.b16 %v1490, %v1489
        %v1501 = vpack.c.b16 %v1492, %v1491
        %v1502 = vpack.c.b16 %v1494, %v1493
        %1511 = vmatprep.subr.bf16.mxu0 0
        %1512 = vmatpush1.bf16.msra.mxu0 %v1502
        %1513 = vmatprep.subr.bf16.mxu0 0
        %1514 = vmatpush1.bf16.msra.mxu0 %v1501
        %1515 = vmatprep.subr.bf16.mxu0 0
        %1516 = vmatpush1.bf16.msra.mxu0 %v1500
        %1517 = vmatprep.subr.bf16.mxu0 0
        %1518 = vmatpush1.bf16.msra.mxu0 %v1499
        %1519 = vmatprep.subr.bf16.mxu0 0
        %1520 = vmatpush1.bf16.msra.mxu0 %v1498
        %1521 = vmatprep.subr.bf16.mxu0 0
        %1522 = vmatpush1.bf16.msra.mxu0 %v1497
        %1523 = vmatprep.subr.bf16.mxu0 0
        %1524 = vmatpush1.bf16.msra.mxu0 %v1496
        %1525 = vmatprep.subr.bf16.mxu0 0
        %1526 = vmatpush1.bf16.msra.mxu0 %v1495
        %1527 = vmatprep.subr.bf16.mxu0 0
        %1528 = vmatpush2.bf16.msra.mxu0 0
        %1529 = vmatprep.subr.bf16.mxu0 0
        %1530 = vmatpush2.bf16.msra.mxu0 0
        %1531 = vmatprep.subr.bf16.mxu0 0
        %1532 = vmatpush2.bf16.msra.mxu0 0
        %1533 = vmatprep.subr.bf16.mxu0 0
        %1534 = vmatpush2.bf16.msra.mxu0 0
        %1535 = vmatprep.subr.bf16.mxu0 0
        %1536 = vmatpush2.bf16.msra.mxu0 0
        %1537 = vmatprep.subr.bf16.mxu0 0
        %1538 = vmatpush2.bf16.msra.mxu0 0
        %1539 = vmatprep.subr.bf16.mxu0 0
        %1540 = vmatpush2.bf16.msra.mxu0 0
        %1541 = vmatprep.subr.bf16.mxu0 0
        %1542 = vmatpush2.bf16.msra.mxu0 0
        %1543 = vmatprep.mubr.bf16.mxu0 0
        %1544 = vmatmul.mubr.bf16.gmra.mxu0 %v1461
        %v1545 = vpop.f32.mrf.mxu0
        %v1546 = vadd.f32 0.0, %v1545
        %v1547 = vpop.f32.mrf.mxu0
        %v1548 = vpop.f32.mrf.mxu0
        %v1549 = vpop.f32.mrf.mxu0
        %1550 = vdwg.mxu0
        %v1551 = vmul.f32 %v1546, %v1462
        %v1553 = vlaneseq
        %v1554 = vshrl.u32 %v1553, 7
        %v1555 = vsub.s32 0, %v1554
        %v1556 = vrot.slane %v1436, %v1555
        %v1558 = vadd.f32 %v1551, %v1556
        %1559 = vst [vmem:[%s596] sm:$0xff] %v1558
        %s1560 = sand.u32 %s363, 1
        %s1561 = scalar_lea.sflag [#allocation4], %s1560
        %s1562 = sand.u32 %s363, 1
        %s1563 = smul.addr %s1562, 8
        %s1564 = scalar_lea.vmem [#allocation14], %s1563
        // Predicated region
        $region109: #{tpu_custom_call.1} parent=79 // pred_check
          %p1565 = pneg %p373
        $region110: #{tpu_custom_call.1} parent=79 // pred_check_branch
          %1567 = sbr.rel (%p1565) target = $region112
        $region111: #{tpu_custom_call.1} parent=79 // pred_region
          %s1569 = ssub.s32 128, 128
          %1570 = vsyncadd %s1561, %s1569
          %s1571 = smul.addr %s35, 128
          %s1572 = scalar_lea.hbm %s15, %s1571
          %s1574 = sshll.u32 %s1564, 4
          %s1575 = int_to_ptr.vmem [resolvable:$true] %s1574
          %1577 = dma.vmem_to_hbm [thread:$0]  %s1575, 128, %s1572, %s1561
        $region112: #{tpu_custom_call.1} parent=79 // pred_fallthru
          _
      $region80: #{tpu_custom_call.1} parent=5 // pred_fallthru
        _
      %p1578 = scmp.le.s32.totalorder 2, %s30
      // Predicated region
      $region113: #{tpu_custom_call.1} parent=5 // pred_check
        %p1579 = pneg %p1578
      $region114: #{tpu_custom_call.1} parent=5 // pred_check_branch
        %1581 = sbr.rel (%p1579) target = $region116
      $region115: #{tpu_custom_call.1} parent=5 // pred_region
        %s1582 = ssub.s32 %s30, 2
        // Predicated region
        $region117: #{tpu_custom_call.1} parent=115 // pred_check
          %p1583 = pneg %p379
        $region118: #{tpu_custom_call.1} parent=115 // pred_check_branch
          %1585 = sbr.rel (%p1583) target = $region120
        $region119: #{tpu_custom_call.1} parent=115 // pred_region
          %s1586 = sand.u32 %s364, 1
          %s1587 = scalar_lea.sflag [#allocation4], %s1586
          %s1588 = sand.u32 %s364, 1
          %s1589 = smul.addr %s1588, 8
          %s1590 = scalar_lea.vmem [#allocation14], %s1589
          %1591 = dma.done %s1587, 128
        $region120: #{tpu_custom_call.1} parent=115 // pred_fallthru
          _
      $region116: #{tpu_custom_call.1} parent=5 // pred_fallthru
        _
    $region6: #{tpu_custom_call.1} parent=1 // loop_footer
      %s34 = sadd.s32 1, %s30
    $region7: #{tpu_custom_call.1} parent=1 // loop_footer_branch
      %29 = sbr.rel target = $region3
    $region8: #{tpu_custom_call.1} parent=1 // loop_exit
      _
    %1592 = vsyncpa [#allocation3], 1
    %s1593 = scalar_lea.sflag [#allocation3], 1
    %1594 = vsyncpa %s1593, 1
    %1595 = vsyncpa [#allocation6], 1
    %1596 = vsyncpa [#allocation9], 1
    %1597 = vsyncpa [#allocation12], 1
    %1598 = vsyncpa [#allocation4], 1
    %s1599 = scalar_lea.sflag [#allocation4], 1
    %1600 = vsyncpa %s1599, 1

</llo_original>
